<compile_context>
chip_gen: v7x
topology: tpu7x:2x2x1
jax: 0.10.0
libtpu: 0.0.40
codegen_flags: <defaults>
</compile_context>

<pallas_src>
import jax
import jax.numpy as jnp
from jax.experimental import pallas as pl
from jax.experimental.pallas import tpu as pltpu


def _round_up(x, m):
    return ((x + m - 1) // m) * m


def _im2col_3x3_bias_bf16(image_nchw):
    """NCHW -> (B, H*W, 9*Cin+1) bf16 patches for a 3x3 / stride 1 / pad 1 conv.

    The trailing column is a constant 1.0 "bias lane": the conv bias is folded
    into the matmul (K = 27 -> 28).  Rows added later by zero-padding H*W carry
    a 0 in this column too, so they contribute exactly ReLU(0) = 0 to the pool
    accumulator and no in-kernel padding mask is required.
    Input is cast to bf16 BEFORE im2col so XLA never materializes an f32 cols array.
    """
    B, Cin, H, W = image_nchw.shape
    x = jnp.transpose(image_nchw, (0, 2, 3, 1)).astype(jnp.bfloat16)   # NHWC bf16
    xp = jnp.pad(x, ((0, 0), (1, 1), (1, 1), (0, 0)))
    patches = [xp[:, di:di + H, dj:dj + W, :] for di in range(3) for dj in range(3)]
    ones = jnp.ones((B, H, W, 1), jnp.bfloat16)
    cols = jnp.concatenate(patches + [ones], axis=-1)                  # (B,H,W,9*Cin+1)
    return cols.reshape(B, H * W, 9 * Cin + 1)


def _fused_encoder_kernel(cols_ref, wc_ref, out_ref, acc_ref):
    """One grid step = (core-split c, batch b, row-tile t) of conv-as-matmul + GAP."""
    t = pl.program_id(2)

    @pl.when(t == 0)
    def _init():
        acc_ref[...] = jnp.zeros_like(acc_ref)

    # conv as matmul with folded bias: (TILE, 28) bf16 @ (28, C) bf16 -> f32 (MXU)
    feat = jnp.dot(cols_ref[...], wc_ref[...], preferred_element_type=jnp.float32)
    feat = jnp.maximum(feat, 0.0)                                      # ReLU only on VPU

    # partial global-average-pool: (TILE//8, 8, C) reshape is layout-free, so this
    # lowers to straight vreg adds into the (8, C) accumulator (no XLU per tile).
    acc_ref[...] += feat.reshape(-1, 8, feat.shape[-1]).sum(axis=0)

    @pl.when(t == pl.num_programs(2) - 1)
    def _finalize():
        # single 8->1 sublane collapse per (c, b); lane-dense (1, C) partial sum out
        out_ref[...] = jnp.sum(acc_ref[...], axis=0, keepdims=True)


def _pretrain_forward(image_nchw, conv_w, conv_b, head_w, head_b,
                      *, tile_rows=4096, num_splits=2):
    B, Cin, H, W = image_nchw.shape
    assert Cin == 3
    C = conv_w.shape[1]
    HW = H * W

    # fold conv bias into the weight (K = 27 -> 28); bf16 operands, f32 MXU accumulation
    wc28 = jnp.concatenate([conv_w, conv_b.reshape(1, C)], axis=0).astype(jnp.bfloat16)

    cols = _im2col_3x3_bias_bf16(image_nchw)                           # (B, HW, 28) bf16
    k_dim = cols.shape[-1]

    # Large row tiles amortize the ~0.35 us per-grid-step overhead; working set at
    # TILE=4096, C=128 is ~4 MB (double-buffered input + f32 feat) -> fits every gen.
    tile = min(_round_up(tile_rows, 16), _round_up(HW, 16))
    n_tiles = _round_up(-(-HW // tile), num_splits)                    # even core split
    hw_pad = n_tiles * tile
    if hw_pad != HW:
        cols = jnp.pad(cols, ((0, 0), (0, hw_pad - HW), (0, 0)))       # zero rows -> add 0
    t_split = n_tiles // num_splits

    sums = pl.pallas_call(
        _fused_encoder_kernel,
        out_shape=jax.ShapeDtypeStruct((num_splits, B, 1, C), jnp.float32),
        grid_spec=pltpu.PrefetchScalarGridSpec(
            num_scalar_prefetch=0,
            grid=(num_splits, B, t_split),
            in_specs=[
                pl.BlockSpec((None, tile, k_dim),
                             lambda c, b, t: (b, c * t_split + t, 0)),  # im2col rows
                pl.BlockSpec((k_dim, C), lambda c, b, t: (0, 0)),       # conv W (+bias row)
            ],
            out_specs=pl.BlockSpec((None, None, 1, C),
                                   lambda c, b, t: (c, b, 0, 0)),       # partial pooled sums
            scratch_shapes=[pltpu.VMEM((8, C), jnp.float32)],
        ),
        compiler_params=pltpu.CompilerParams(
            dimension_semantics=("parallel", "parallel", "arbitrary"),
            vmem_limit_bytes=48 * 1024 * 1024,      # safe on v7x's 64 MiB physical VMEM
            allow_input_fusion=[True, False],       # fuse pad/concat/convert into operand
        ),
    )(cols, wc28)                                                      # (splits, B, 1, C)

    # tiny epilogue in XLA: combine core-split partials, mean, dual heads, sigmoid
    pooled = jnp.sum(sums, axis=0).reshape(B, C) * (1.0 / HW)          # (B, C)
    out20 = jax.nn.sigmoid(pooled @ head_w + head_b)                   # (B, 20)
    x0 = out20[:, :10].reshape(-1, 5, 2)   # spinal_head(x).sigmoid().view(-1,5,2)
    x1 = out20[:, 10:].reshape(-1, 5, 2)   # neural_head(x).sigmoid().view(-1,5,2)
    return jnp.stack([x0, x1], axis=-1)    # (B, 5, 2, 2)


_forward_jit = jax.jit(_pretrain_forward, static_argnames=("tile_rows", "num_splits"))


def _reference_forward(image_nchw, conv_w, conv_b, head_w, head_b):
    """Pure-JAX f32 reference for correctness checking."""
    B, Cin, H, W = image_nchw.shape
    x = jnp.transpose(image_nchw, (0, 2, 3, 1))
    xp = jnp.pad(x, ((0, 0), (1, 1), (1, 1), (0, 0)))
    patches = [xp[:, di:di + H, dj:dj + W, :] for di in range(3) for dj in range(3)]
    cols = jnp.concatenate(patches, axis=-1).reshape(B, H * W, 9 * Cin)
    feat = jnp.maximum(jnp.einsum("bpk,kc->bpc", cols, conv_w) + conv_b[None], 0.0)
    pooled = jnp.mean(feat, axis=1)                                    # (B, C)
    out20 = jax.nn.sigmoid(pooled @ head_w + head_b)                   # (B, 20)
    x0 = out20[:, :10].reshape(-1, 5, 2)
    x1 = out20[:, 10:].reshape(-1, 5, 2)
    return jnp.stack([x0, x1], axis=-1)


class PretrainModelPallas:
    """Pallas stand-in for PretrainModel (synthetic conv+GAP encoder + dual heads)."""

    def __init__(self, key, c_feat=128):
        # TODO(synk): no timm checkpoint / architecture available in-script — the
        # encoder is a representative conv3x3(3->c_feat)+ReLU+GAP stand-in; real
        # backbone weights (C_out,C_in,kh,kw) would need permuting to
        # (kh*kw*C_in, C_out), and torch Linear weights transposing to (in, out).
        self.c_feat = c_feat
        k1, k2, k3, k4, k5, k6 = jax.random.split(key, 6)
        self.conv_w = jax.random.normal(k1, (27, c_feat), jnp.float32) * 0.1
        self.conv_b = jax.random.normal(k2, (1, c_feat), jnp.float32) * 0.1
        spinal_w = jax.random.normal(k3, (c_feat, 10), jnp.float32) * 0.1
        neural_w = jax.random.normal(k4, (c_feat, 10), jnp.float32) * 0.1
        spinal_b = jax.random.normal(k5, (10,), jnp.float32) * 0.1
        neural_b = jax.random.normal(k6, (10,), jnp.float32) * 0.1
        self.head_w = jnp.concatenate([spinal_w, neural_w], axis=1)    # (c_feat, 20)
        self.head_b = jnp.concatenate([spinal_b, neural_b])[None, :]   # (1, 20)

    def __call__(self, inputs, tile_rows=4096, num_splits=2):
        image = inputs["image"] if isinstance(inputs, dict) else inputs
        return _forward_jit(image, self.conv_w, self.conv_b,
                            self.head_w, self.head_b,
                            tile_rows=tile_rows, num_splits=num_splits)


if __name__ == "__main__":
    key = jax.random.PRNGKey(0)
    k_param, k_input = jax.random.split(key)

    model = PretrainModelPallas(k_param, c_feat=128)

    # input dict {'image': NCHW tensor}, small shapes
    image = jax.random.normal(k_input, (2, 3, 16, 16), jnp.float32)

    out = model({"image": image})
    out = jax.block_until_ready(out)

    assert out.shape == (2, 5, 2, 2), out.shape
    assert bool(jnp.all((out >= 0.0) & (out <= 1.0)))

    ref = _reference_forward(image, model.conv_w, model.conv_b,
                             model.head_w, model.head_b)
    max_err = float(jnp.max(jnp.abs(out - ref)))
    assert max_err < 2e-2, f"max abs error vs reference: {max_err}"

    print("KERNEL_OK")
</pallas_src>

<mosaic_0001>
module attributes {stable_mosaic.version = 11 : i64} {
  func.func @_fused_encoder_kernel(%arg0: i32, %arg1: i32, %arg2: i32, %arg3: memref<1x256x28xbf16, #tpu.memory_space<vmem>>, %arg4: memref<28x128xbf16, #tpu.memory_space<vmem>>, %arg5: memref<1x1x1x128xf32, #tpu.memory_space<vmem>>, %arg6: memref<8x128xf32, #tpu.memory_space<vmem>>) attributes {dimension_semantics = [#tpu.dimension_semantics<parallel>, #tpu.dimension_semantics<parallel>, #tpu.dimension_semantics<arbitrary>], iteration_bounds = array<i64: 2, 2, 1>, scalar_prefetch = 0 : i64, scratch_operands = 1 : i64, tpu.core_type = #tpu.core_type<tc>, window_params = [{transform_indices = @transform_0, window_bounds = array<i64: 1, 256, 28>}, {pipeline_mode = #tpu.pipeline_mode<synchronous>, transform_indices = @transform_1, window_bounds = array<i64: 28, 128>}, {transform_indices = @transform_2, window_bounds = array<i64: 1, 1, 1, 128>}]} {
    %c0_i32 = arith.constant 0 : i32
    %0 = arith.cmpi eq, %arg2, %c0_i32 : i32
    %1 = arith.extui %0 : i1 to i32
    %c0_i32_0 = arith.constant 0 : i32
    %2 = arith.cmpi ne, %1, %c0_i32_0 : i32
    scf.if %2 {
      %cst_13 = arith.constant 0.000000e+00 : f32
      %17 = vector.broadcast %cst_13 : f32 to vector<8x128xf32>
      %c0_14 = arith.constant 0 : index
      %c0_15 = arith.constant 0 : index
      %18 = vector.load %arg6[%c0_14, %c0_15] : memref<8x128xf32, #tpu.memory_space<vmem>>, vector<8x128xf32>
      tpu.vector_store %arg6[%c0_14, %c0_15], %17 {strides = array<i32>} : memref<8x128xf32, #tpu.memory_space<vmem>>, vector<8x128xf32>,
    } else {
    }
    %c0 = arith.constant 0 : index
    %c0_1 = arith.constant 0 : index
    %c0_2 = arith.constant 0 : index
    %3 = vector.load %arg3[%c0, %c0_1, %c0_2] : memref<1x256x28xbf16, #tpu.memory_space<vmem>>, vector<1x256x28xbf16>
    %4 = vector.shape_cast %3 : vector<1x256x28xbf16> to vector<256x28xbf16>
    %c0_3 = arith.constant 0 : index
    %c0_4 = arith.constant 0 : index
    %5 = vector.load %arg4[%c0_3, %c0_4] : memref<28x128xbf16, #tpu.memory_space<vmem>>, vector<28x128xbf16>
    %cst = arith.constant dense<0.000000e+00> : vector<256x128xf32>
    %6 = tpu.matmul %4, %5, %cst {dimension_numbers = #tpu.dot_dimension_numbers<[1], [0], [0], [1], [0, 0, 1, 1], [], []>} : vector<256x28xbf16>, vector<28x128xbf16>, vector<256x128xf32> -> vector<256x128xf32>
    %cst_5 = arith.constant 0.000000e+00 : f32
    %7 = vector.broadcast %cst_5 : f32 to vector<256x128xf32>
    %8 = arith.maximumf %6, %7 : vector<256x128xf32>
    %c0_6 = arith.constant 0 : index
    %c0_7 = arith.constant 0 : index
    %9 = vector.load %arg6[%c0_6, %c0_7] : memref<8x128xf32, #tpu.memory_space<vmem>>, vector<8x128xf32>
    %10 = vector.shape_cast %8 : vector<256x128xf32> to vector<32x8x128xf32>
    %cst_8 = arith.constant dense<0.000000e+00> : vector<8x128xf32>
    %11 = vector.multi_reduction <add>, %10, %cst_8 [0] : vector<32x8x128xf32> to vector<8x128xf32>
    %12 = arith.addf %9, %11 : vector<8x128xf32>
    %c0_9 = arith.constant 0 : index
    %c0_10 = arith.constant 0 : index
    %13 = vector.load %arg6[%c0_9, %c0_10] : memref<8x128xf32, #tpu.memory_space<vmem>>, vector<8x128xf32>
    tpu.vector_store %arg6[%c0_9, %c0_10], %12 {strides = array<i32>} : memref<8x128xf32, #tpu.memory_space<vmem>>, vector<8x128xf32>,
    %c0_i32_11 = arith.constant 0 : i32
    %14 = arith.cmpi eq, %arg2, %c0_i32_11 : i32
    %15 = arith.extui %14 : i1 to i32
    %c0_i32_12 = arith.constant 0 : i32
    %16 = arith.cmpi ne, %15, %c0_i32_12 : i32
    scf.if %16 {
      %c0_13 = arith.constant 0 : index
      %c0_14 = arith.constant 0 : index
      %17 = vector.load %arg6[%c0_13, %c0_14] : memref<8x128xf32, #tpu.memory_space<vmem>>, vector<8x128xf32>
      %cst_15 = arith.constant dense<0.000000e+00> : vector<128xf32>
      %18 = vector.multi_reduction <add>, %17, %cst_15 [0] : vector<8x128xf32> to vector<128xf32>
      %19 = vector.shape_cast %18 : vector<128xf32> to vector<1x128xf32>
      %c0_16 = arith.constant 0 : index
      %c0_17 = arith.constant 0 : index
      %c0_18 = arith.constant 0 : index
      %c0_19 = arith.constant 0 : index
      %20 = vector.load %arg5[%c0_16, %c0_17, %c0_18, %c0_19] : memref<1x1x1x128xf32, #tpu.memory_space<vmem>>, vector<1x1x1x128xf32>
      %21 = vector.shape_cast %20 : vector<1x1x1x128xf32> to vector<1x128xf32>
      %22 = vector.shape_cast %19 : vector<1x128xf32> to vector<1x1x1x128xf32>
      tpu.vector_store %arg5[%c0_16, %c0_17, %c0_18, %c0_19], %22 {strides = array<i32>} : memref<1x1x1x128xf32, #tpu.memory_space<vmem>>, vector<1x1x1x128xf32>,
    } else {
    }
    return
  }
  func.func @transform_0(%arg0: i32, %arg1: i32, %arg2: i32) -> (i32, i32, i32) {
    %c1_i32 = arith.constant 1 : i32
    %0 = arith.muli %arg0, %c1_i32 : i32
    %1 = arith.addi %0, %arg2 : i32
    %c0_i32 = arith.constant 0 : i32
    %c0_i32_0 = arith.constant 0 : i32
    return %arg1, %1, %c0_i32 : i32, i32, i32
  }
  func.func @transform_1(%arg0: i32, %arg1: i32, %arg2: i32) -> (i32, i32) {
    %c0_i32 = arith.constant 0 : i32
    %c0_i32_0 = arith.constant 0 : i32
    %c0_i32_1 = arith.constant 0 : i32
    return %c0_i32, %c0_i32_0 : i32, i32
  }
  func.func @transform_2(%arg0: i32, %arg1: i32, %arg2: i32) -> (i32, i32, i32, i32) {
    %c0_i32 = arith.constant 0 : i32
    %c0_i32_0 = arith.constant 0 : i32
    %c0_i32_1 = arith.constant 0 : i32
    return %arg0, %arg1, %c0_i32, %c0_i32_0 : i32, i32, i32, i32
  }
}

</mosaic_0001>

<llo_original>
// kernel: _pretrain_forward.2
$region0: #{_pretrain_forward.2}
  #allocation0 [shape = 'u32[]', space=smem, size = 0x4, offset = 0x4, fixed_abs, tag = 'smem constant byte address 0x4 - core index']
  #allocation1 [shape = 'u32[144,128]{1,0:T(1,128)}', space=vmem, size = 0x12000, scoped, tag = 'internal scratch']
  #allocation2 [shape = 'f32[8,128]{1,0:T(8,128)}', space=vmem, size = 0x1000, scoped, tag = 'scratch operand']
  #allocation3 [shape = 'u32[2048]{0}', space=vmem, size = 0x2000, scoped, tag = 'scoped memory for _pretrain_forward.2']
  #allocation4 [shape = 'u32[2048]{0}', space=vmem, size = 0x2000, scoped, tag = 'scoped memory for _pretrain_forward.2']
  #allocation5 [shape = 'u32[2048]{0}', space=vmem, size = 0x2000, scoped, tag = 'scoped memory for _pretrain_forward.2']
  #allocation6 [shape = 'u32[2048]{0}', space=vmem, size = 0x2000, scoped, tag = 'scoped memory for _pretrain_forward.2']
  #allocation7 [shape = 'u32[2048]{0}', space=vmem, size = 0x2000, scoped, tag = 'scoped memory for _pretrain_forward.2']
  %s0 = inlined_call_operand.vmem [shape: bf16[28,128], index: 0, kind: input, shape index: {}]
  %s1 = inlined_call_operand.vmem [shape: bf16[2,256,28], index: 1, kind: input, shape index: {}]
  %s2 = inlined_call_operand.<no memory space> [shape: bf16[], index: 2, kind: input, shape index: {}]
  %s3 = inlined_call_operand.vmem [shape: f32[2,2,1,128], index: 3, kind: output, shape index: {}]
  %s4 = sld [smem:[#allocation0]]
  $region49: #{_pretrain_forward.2} parent=0
    _
  %s6 = ssub.s32 1, %s4
  %s7 = scalar_select 0, %s6, %s4
  %v8 = vstv %s2
  %v9 = vunpack.i.l.bf16 %v8
  %v11 = vunpack.i.h.bf16 %v8
  loop: start=0, step=1, limit=6
  $region2: #{_pretrain_forward.2} parent=0 // loop_pre_header
    _
  $region3: #{_pretrain_forward.2} parent=0 // loop_header
    %s14 = sphi 0, %s18
    %p15 = scmp.ge.s32.totalorder %s14, 6
    %s21 = sphi 0, %s40
    %s22 = sphi 0, %s36
    %s23 = sphi 0, %s32
    %s24 = sphi 0, %s21
    %s25 = sphi 0, %s22
    %s26 = sphi 0, %s23
    %s27 = sphi 0, %s24
    %s28 = sphi 0, %s25
    %s29 = sphi 0, %s26
    %s47 = sphi 0, %s49
    %s50 = sphi 0, %s47
    %s51 = sphi 0, %s50
    %s67 = sphi 0, %s51
    %s71 = sphi 0, %s71
    %s73 = sphi 0, %s71
    %s74 = sphi 0, %s73
    %s88 = sphi 0, %s74
    %s96 = sphi 0, %s98
    %s99 = sphi 0, %s96
    %s100 = sphi 0, %s99
    %s116 = sphi 0, %s100
  $region4: #{_pretrain_forward.2} parent=0 // loop_header_branch
    %17 = sbr.rel (%p15) target = $region8
  $region5: #{_pretrain_forward.2} parent=0 // loop_body
    %s19 = ssub.s32 %s14, 1
    %s20 = ssub.s32 %s14, 2
    %s30 = sadd.s32 1, %s23
    %p31 = scmp.ge.s32.totalorder %s30, 1
    %s32 = scalar_select %p31, 0, %s30
    %s33 = sadd.s32 1, %s22
    %s34 = scalar_select %p31, %s33, %s22
    %p35 = scmp.ge.s32.totalorder %s34, 2
    %s36 = scalar_select %p35, 0, %s34
    %s37 = sadd.s32 1, %s21
    %s38 = scalar_select %p35, %s37, %s21
    %p39 = scmp.ge.s32.totalorder %s38, 2
    %s40 = scalar_select %p39, 0, %s38
    %s41 = sadd.s32 %s21, %s23
    %s42 = sadd.s32 %s40, %s32
    %s43 = ssub.s32 %s22, %s36
    %s44 = ssub.s32 %s41, %s42
    %s45 = sor.u32 %s43, %s44
    %p46 = scmp.eq.s32.totalorder %s45, 0
    %s48 = sadd.s32 %s47, 1
    %s49 = scalar_select %p46, %s47, %s48
    %p52 = pneg %p46
    %p53 = scmp.eq.s32.totalorder %s14, 3
    %p54 = por %p52, %p53
    %p55 = scmp.ne.s32.totalorder %s47, %s50
    %p56 = scmp.eq.s32.totalorder %s14, 0
    %p57 = por %p55, %p56
    %p58 = scmp.ne.s32.totalorder %s47, %s50
    %p59 = scmp.eq.s32.totalorder %s19, 3
    %p60 = por %p58, %p59
    %p61 = scmp.ne.s32.totalorder %s50, %s51
    %p62 = scmp.eq.s32.totalorder %s19, 0
    %p63 = por %p61, %p62
    %p64 = scmp.ne.s32.totalorder %s50, %s51
    %p65 = scmp.eq.s32.totalorder %s20, 3
    %p66 = por %p64, %p65
    %p68 = scmp.ne.s32.totalorder %s51, %s67
    %p69 = scmp.eq.s32.totalorder %s20, 0
    %p70 = por %p68, %p69
    %s72 = sadd.s32 %s71, 1
    %p75 = scmp.eq.s32.totalorder %s14, 3
    %p76 = scmp.ne.s32.totalorder %s71, %s73
    %p77 = scmp.eq.s32.totalorder %s14, 0
    %p78 = por %p76, %p77
    %p79 = scmp.ne.s32.totalorder %s71, %s73
    %p80 = scmp.eq.s32.totalorder %s19, 3
    %p81 = por %p79, %p80
    %p82 = scmp.ne.s32.totalorder %s73, %s74
    %p83 = scmp.eq.s32.totalorder %s19, 0
    %p84 = por %p82, %p83
    %p85 = scmp.ne.s32.totalorder %s73, %s74
    %p86 = scmp.eq.s32.totalorder %s20, 3
    %p87 = por %p85, %p86
    %p89 = scmp.ne.s32.totalorder %s74, %s88
    %p90 = scmp.eq.s32.totalorder %s20, 0
    %p91 = por %p89, %p90
    %s92 = ssub.s32 %s21, %s40
    %s93 = ssub.s32 %s22, %s36
    %s94 = sor.u32 %s92, %s93
    %p95 = scmp.eq.s32.totalorder %s94, 0
    %s97 = sadd.s32 %s96, 1
    %s98 = scalar_select %p95, %s96, %s97
    %p101 = pneg %p95
    %p102 = scmp.eq.s32.totalorder %s14, 3
    %p103 = por %p101, %p102
    %p104 = scmp.ne.s32.totalorder %s96, %s99
    %p105 = scmp.eq.s32.totalorder %s14, 0
    %p106 = por %p104, %p105
    %p107 = scmp.ne.s32.totalorder %s96, %s99
    %p108 = scmp.eq.s32.totalorder %s19, 3
    %p109 = por %p107, %p108
    %p110 = scmp.ne.s32.totalorder %s99, %s100
    %p111 = scmp.eq.s32.totalorder %s19, 0
    %p112 = por %p110, %p111
    %p113 = scmp.ne.s32.totalorder %s99, %s100
    %p114 = scmp.eq.s32.totalorder %s20, 3
    %p115 = por %p113, %p114
    %p117 = scmp.ne.s32.totalorder %s100, %s116
    %p118 = scmp.eq.s32.totalorder %s20, 0
    %p119 = por %p117, %p118
    %p120 = scmp.le.s32.totalorder 1, %s14
    %p121 = scmp.lt.s32.totalorder %s14, 5
    %p122 = pnand %p120, %p121
    %p123 = pneg %p122
    // Predicated region
    $region9: #{_pretrain_forward.2} parent=5 // pred_check
      _
    $region10: #{_pretrain_forward.2} parent=5 // pred_check_branch
      %125 = sbr.rel (%p122) target = $region12
    $region11: #{_pretrain_forward.2} parent=5 // pred_region
      %s126 = ssub.s32 %s14, 1
      // Predicated region
      $region13: #{_pretrain_forward.2} parent=11 // pred_check
        %p127 = pneg %p84
      $region14: #{_pretrain_forward.2} parent=11 // pred_check_branch
        %129 = sbr.rel (%p127) target = $region16
      $region15: #{_pretrain_forward.2} parent=11 // pred_region
        _
      $region16: #{_pretrain_forward.2} parent=11 // pred_fallthru
        _
    $region12: #{_pretrain_forward.2} parent=5 // pred_fallthru
      _
    %p130 = scmp.lt.s32.totalorder %s14, 4
    // Predicated region
    $region17: #{_pretrain_forward.2} parent=5 // pred_check
      %p131 = pneg %p130
    $region18: #{_pretrain_forward.2} parent=5 // pred_check_branch
      %133 = sbr.rel (%p131) target = $region20
    $region19: #{_pretrain_forward.2} parent=5 // pred_region
      // Predicated region
      $region21: #{_pretrain_forward.2} parent=19 // pred_check
        %p134 = pneg %p57
      $region22: #{_pretrain_forward.2} parent=19 // pred_check_branch
        %136 = sbr.rel (%p134) target = $region24
      $region23: #{_pretrain_forward.2} parent=19 // pred_region
        %s137 = sadd.s32 %s21, %s23
        %s138 = smul.u32 32, %s137
        %s139 = ssub.s32 32, %s138
        %s140 = smul.u32 64, %s139
        %p141 = scmp.lt.s32.totalorder %s22, 1
        %s142 = scalar_select %p141, %s22, 1
        %p143 = scmp.lt.s32.totalorder %s138, 31
        %s144 = scalar_select %p143, %s138, 31
        %s145 = smul.addr %s142, 32
        %s146 = sadd.s32 %s144, %s145
        %s147 = smul.addr %s146, 4
        %s148 = scalar_lea.vmem %s1, %s147
        %s149 = sadd.s32 %s21, %s23
        %s150 = smul.u32 32, %s149
        %s151 = ssub.s32 32, %s150
        %s152 = smul.u32 64, %s151
      $region24: #{_pretrain_forward.2} parent=19 // pred_fallthru
        _
    $region20: #{_pretrain_forward.2} parent=5 // pred_fallthru
      _
    %p153 = scmp.le.s32.totalorder 1, %s14
    %p154 = scmp.lt.s32.totalorder %s14, 5
    %p155 = pnand %p153, %p154
    %p156 = pneg %p155
    // Predicated region
    $region25: #{_pretrain_forward.2} parent=5 // pred_check
      _
    $region26: #{_pretrain_forward.2} parent=5 // pred_check_branch
      %158 = sbr.rel (%p155) target = $region28
    $region27: #{_pretrain_forward.2} parent=5 // pred_region
      #allocation8 [shape = 'u8[65536]{0}', space=vmem, size = 0x10000, dematerialized = true, scoped, tag = 'FusionAdapter Buffer %fusion.5 = bf16[2,512,28]{2,1,0:T(8,128)(2,1)} fusion(%param_1.22, %param_2.11), kind=kLoop, calls=%fused_computation.6.clone, metadata={op_name="jit(_pretrain_forward)/jit(_pad)/pad" stack_frame_id=18}']
      %s159 = ssub.s32 %s14, 1
      %s160 = sadd.s32 %s24, %s26
      %s161 = smul.u32 32, %s160
      %s162 = ssub.s32 32, %s161
      %s163 = smul.u32 64, %s162
      %p164 = scmp.lt.s32.totalorder %s25, 1
      %s165 = scalar_select %p164, %s25, 1
      %p166 = scmp.lt.s32.totalorder %s161, 31
      %s167 = scalar_select %p166, %s161, 31
      %s168 = smul.addr %s165, 32
      %s169 = sadd.s32 %s167, %s168
      %s170 = smul.addr %s169, 4
      %s171 = scalar_lea.vmem %s1, %s170
      %p172 = pneg %p63
      %p173 = pneg %p60
      %p174 = pneg %p84
      %p175 = pneg %p81
      %p176 = pneg %p112
      %p177 = pneg %p109
      %p178 = scmp.lt.s32.totalorder %s24, 1
      %s179 = scalar_select %p178, %s24, 1
      %p180 = scmp.lt.s32.totalorder %s25, 1
      %s181 = scalar_select %p180, %s25, 1
      %s182 = smul.addr %s179, 2
      %s183 = sadd.s32 %s181, %s182
      %s184 = scalar_lea.vmem %s3, %s183
      %s185 = sadd.s32 %s24, %s26
      %s186 = smul.u32 32, %s185
      %s187 = ssub.s32 32, %s186
      %s188 = smul.u32 64, %s187
      %p189 = scmp.lt.s32.totalorder %s25, 1
      %s190 = scalar_select %p189, %s25, 1
      %p191 = scmp.lt.s32.totalorder %s186, 31
      %s192 = scalar_select %p191, %s186, 31
      %s193 = smul.addr %s190, 32
      %s194 = sadd.s32 %s192, %s193
      %s195 = smul.addr %s194, 4
      %s196 = scalar_lea.vmem %s1, %s195
      %s197 = sadd.s32 %s24, %s26
      %s198 = smul.u32 32, %s197
      %s199 = ssub.s32 32, %s198
      %s200 = smul.u32 64, %s199
      %p201 = scmp.lt.s32.totalorder %s24, 1
      %s202 = scalar_select %p201, %s24, 1
      %p203 = scmp.lt.s32.totalorder %s25, 1
      %s204 = scalar_select %p203, %s25, 1
      %s205 = smul.addr %s202, 2
      %s206 = sadd.s32 %s204, %s205
      %s207 = scalar_lea.vmem %s3, %s206
      %s208 = ssub.s32 31, %s198
      %p209 = scmp.lt.s32.totalorder %s208, 0
      %s210 = scalar_select %p209, 0, 255
      %s211 = sshrl.u32 %s210, 1
      %s212 = sor.u32 %s210, %s211
      %s213 = sand.u32 %s212, 85
      %s214 = sshrl.u32 %s213, 1
      %s215 = sor.u32 %s213, %s214
      %s216 = sand.u32 51, %s215
      %s217 = sshrl.u32 %s216, 2
      %s218 = sor.u32 %s216, %s217
      %s219 = sand.u32 15, %s218
      %v220 = vld [vmem:[%s196] sm:%s219]
      %v221 = vunpack.c.l.bf16 %v220
      %v222 = vunpack.c.h.bf16 %v220
      %s223 = ssub.s32 31, %s198
      %v224 = vstv %s223
      %vm225 = vcmp.lt.s32.totalorder %v224, 0
      %v226 = vsel %vm225, %v9, %v221
      %v227 = vlaneseq
      %v228 = vand.u32 %v227, 127
      %vm230 = vcmp.lt.s32.totalorder %v228, 28
      %v231 = vsel %vm230, %v226, %v9
      %v232 = vpack.c.bf16 0.0, %v231
      %234 = vst [vmem:[#allocation8] sm:$0xf] %v232
      %s235 = scalar_lea.vmem %s196, 4
      %s236 = sadd.s32 %s198, 1
      %s237 = ssub.s32 31, %s236
      %p238 = scmp.lt.s32.totalorder %s237, 0
      %s239 = scalar_select %p238, 0, 255
      %s240 = sshrl.u32 %s239, 1
      %s241 = sor.u32 %s239, %s240
      %s242 = sand.u32 %s241, 85
      %s243 = sshrl.u32 %s242, 1
      %s244 = sor.u32 %s242, %s243
      %s245 = sand.u32 51, %s244
      %s246 = sshrl.u32 %s245, 2
      %s247 = sor.u32 %s245, %s246
      %s248 = sand.u32 15, %s247
      %v249 = vld [vmem:[%s235] sm:%s248]
      %v250 = vunpack.c.l.bf16 %v249
      %v251 = vunpack.c.h.bf16 %v249
      %s252 = sadd.s32 %s198, 1
      %s253 = ssub.s32 31, %s252
      %v254 = vstv %s253
      %vm255 = vcmp.lt.s32.totalorder %v254, 0
      %v256 = vsel %vm255, %v9, %v250
      %v257 = vlaneseq
      %v258 = vand.u32 %v257, 127
      %vm260 = vcmp.lt.s32.totalorder %v258, 28
      %v261 = vsel %vm260, %v256, %v9
      %s262 = scalar_lea.vmem [#allocation8], 4
      %v263 = vpack.c.bf16 0.0, %v261
      %265 = vst [vmem:[%s262] sm:$0xf] %v263
      %s266 = scalar_lea.vmem %s196, 8
      %s267 = sadd.s32 %s198, 2
      %s268 = ssub.s32 31, %s267
      %p269 = scmp.lt.s32.totalorder %s268, 0
      %s270 = scalar_select %p269, 0, 255
      %s271 = sshrl.u32 %s270, 1
      %s272 = sor.u32 %s270, %s271
      %s273 = sand.u32 %s272, 85
      %s274 = sshrl.u32 %s273, 1
      %s275 = sor.u32 %s273, %s274
      %s276 = sand.u32 51, %s275
      %s277 = sshrl.u32 %s276, 2
      %s278 = sor.u32 %s276, %s277
      %s279 = sand.u32 15, %s278
      %v280 = vld [vmem:[%s266] sm:%s279]
      %v281 = vunpack.c.l.bf16 %v280
      %v282 = vunpack.c.h.bf16 %v280
      %s283 = sadd.s32 %s198, 2
      %s284 = ssub.s32 31, %s283
      %v285 = vstv %s284
      %vm286 = vcmp.lt.s32.totalorder %v285, 0
      %v287 = vsel %vm286, %v9, %v281
      %v288 = vlaneseq
      %v289 = vand.u32 %v288, 127
      %vm291 = vcmp.lt.s32.totalorder %v289, 28
      %v292 = vsel %vm291, %v287, %v9
      %s293 = scalar_lea.vmem [#allocation8], 8
      %v294 = vpack.c.bf16 0.0, %v292
      %296 = vst [vmem:[%s293] sm:$0xf] %v294
      %s297 = scalar_lea.vmem %s196, 12
      %s298 = sadd.s32 %s198, 3
      %s299 = ssub.s32 31, %s298
      %p300 = scmp.lt.s32.totalorder %s299, 0
      %s301 = scalar_select %p300, 0, 255
      %s302 = sshrl.u32 %s301, 1
      %s303 = sor.u32 %s301, %s302
      %s304 = sand.u32 %s303, 85
      %s305 = sshrl.u32 %s304, 1
      %s306 = sor.u32 %s304, %s305
      %s307 = sand.u32 51, %s306
      %s308 = sshrl.u32 %s307, 2
      %s309 = sor.u32 %s307, %s308
      %s310 = sand.u32 15, %s309
      %v311 = vld [vmem:[%s297] sm:%s310]
      %v312 = vunpack.c.l.bf16 %v311
      %v313 = vunpack.c.h.bf16 %v311
      %s314 = sadd.s32 %s198, 3
      %s315 = ssub.s32 31, %s314
      %v316 = vstv %s315
      %vm317 = vcmp.lt.s32.totalorder %v316, 0
      %v318 = vsel %vm317, %v9, %v312
      %v319 = vlaneseq
      %v320 = vand.u32 %v319, 127
      %vm322 = vcmp.lt.s32.totalorder %v320, 28
      %v323 = vsel %vm322, %v318, %v9
      %s324 = scalar_lea.vmem [#allocation8], 12
      %v325 = vpack.c.bf16 0.0, %v323
      %327 = vst [vmem:[%s324] sm:$0xf] %v325
      %s328 = scalar_lea.vmem %s196, 16
      %s329 = sadd.s32 %s198, 4
      %s330 = ssub.s32 31, %s329
      %p331 = scmp.lt.s32.totalorder %s330, 0
      %s332 = scalar_select %p331, 0, 255
      %s333 = sshrl.u32 %s332, 1
      %s334 = sor.u32 %s332, %s333
      %s335 = sand.u32 %s334, 85
      %s336 = sshrl.u32 %s335, 1
      %s337 = sor.u32 %s335, %s336
      %s338 = sand.u32 51, %s337
      %s339 = sshrl.u32 %s338, 2
      %s340 = sor.u32 %s338, %s339
      %s341 = sand.u32 15, %s340
      %v342 = vld [vmem:[%s328] sm:%s341]
      %v343 = vunpack.c.l.bf16 %v342
      %v344 = vunpack.c.h.bf16 %v342
      %s345 = sadd.s32 %s198, 4
      %s346 = ssub.s32 31, %s345
      %v347 = vstv %s346
      %vm348 = vcmp.lt.s32.totalorder %v347, 0
      %v349 = vsel %vm348, %v9, %v343
      %v350 = vlaneseq
      %v351 = vand.u32 %v350, 127
      %vm353 = vcmp.lt.s32.totalorder %v351, 28
      %v354 = vsel %vm353, %v349, %v9
      %s355 = scalar_lea.vmem [#allocation8], 16
      %v356 = vpack.c.bf16 0.0, %v354
      %358 = vst [vmem:[%s355] sm:$0xf] %v356
      %s359 = scalar_lea.vmem %s196, 20
      %s360 = sadd.s32 %s198, 5
      %s361 = ssub.s32 31, %s360
      %p362 = scmp.lt.s32.totalorder %s361, 0
      %s363 = scalar_select %p362, 0, 255
      %s364 = sshrl.u32 %s363, 1
      %s365 = sor.u32 %s363, %s364
      %s366 = sand.u32 %s365, 85
      %s367 = sshrl.u32 %s366, 1
      %s368 = sor.u32 %s366, %s367
      %s369 = sand.u32 51, %s368
      %s370 = sshrl.u32 %s369, 2
      %s371 = sor.u32 %s369, %s370
      %s372 = sand.u32 15, %s371
      %v373 = vld [vmem:[%s359] sm:%s372]
      %v374 = vunpack.c.l.bf16 %v373
      %v375 = vunpack.c.h.bf16 %v373
      %s376 = sadd.s32 %s198, 5
      %s377 = ssub.s32 31, %s376
      %v378 = vstv %s377
      %vm379 = vcmp.lt.s32.totalorder %v378, 0
      %v380 = vsel %vm379, %v9, %v374
      %v381 = vlaneseq
      %v382 = vand.u32 %v381, 127
      %vm384 = vcmp.lt.s32.totalorder %v382, 28
      %v385 = vsel %vm384, %v380, %v9
      %s386 = scalar_lea.vmem [#allocation8], 20
      %v387 = vpack.c.bf16 0.0, %v385
      %389 = vst [vmem:[%s386] sm:$0xf] %v387
      %s390 = scalar_lea.vmem %s196, 24
      %s391 = sadd.s32 %s198, 6
      %s392 = ssub.s32 31, %s391
      %p393 = scmp.lt.s32.totalorder %s392, 0
      %s394 = scalar_select %p393, 0, 255
      %s395 = sshrl.u32 %s394, 1
      %s396 = sor.u32 %s394, %s395
      %s397 = sand.u32 %s396, 85
      %s398 = sshrl.u32 %s397, 1
      %s399 = sor.u32 %s397, %s398
      %s400 = sand.u32 51, %s399
      %s401 = sshrl.u32 %s400, 2
      %s402 = sor.u32 %s400, %s401
      %s403 = sand.u32 15, %s402
      %v404 = vld [vmem:[%s390] sm:%s403]
      %v405 = vunpack.c.l.bf16 %v404
      %v406 = vunpack.c.h.bf16 %v404
      %s407 = sadd.s32 %s198, 6
      %s408 = ssub.s32 31, %s407
      %v409 = vstv %s408
      %vm410 = vcmp.lt.s32.totalorder %v409, 0
      %v411 = vsel %vm410, %v9, %v405
      %v412 = vlaneseq
      %v413 = vand.u32 %v412, 127
      %vm415 = vcmp.lt.s32.totalorder %v413, 28
      %v416 = vsel %vm415, %v411, %v9
      %s417 = scalar_lea.vmem [#allocation8], 24
      %v418 = vpack.c.bf16 0.0, %v416
      %420 = vst [vmem:[%s417] sm:$0xf] %v418
      %s421 = scalar_lea.vmem %s196, 28
      %s422 = sadd.s32 %s198, 7
      %s423 = ssub.s32 31, %s422
      %p424 = scmp.lt.s32.totalorder %s423, 0
      %s425 = scalar_select %p424, 0, 255
      %s426 = sshrl.u32 %s425, 1
      %s427 = sor.u32 %s425, %s426
      %s428 = sand.u32 %s427, 85
      %s429 = sshrl.u32 %s428, 1
      %s430 = sor.u32 %s428, %s429
      %s431 = sand.u32 51, %s430
      %s432 = sshrl.u32 %s431, 2
      %s433 = sor.u32 %s431, %s432
      %s434 = sand.u32 15, %s433
      %v435 = vld [vmem:[%s421] sm:%s434]
      %v436 = vunpack.c.l.bf16 %v435
      %v437 = vunpack.c.h.bf16 %v435
      %s438 = sadd.s32 %s198, 7
      %s439 = ssub.s32 31, %s438
      %v440 = vstv %s439
      %vm441 = vcmp.lt.s32.totalorder %v440, 0
      %v442 = vsel %vm441, %v9, %v436
      %v443 = vlaneseq
      %v444 = vand.u32 %v443, 127
      %vm446 = vcmp.lt.s32.totalorder %v444, 28
      %v447 = vsel %vm446, %v442, %v9
      %s448 = scalar_lea.vmem [#allocation8], 28
      %v449 = vpack.c.bf16 0.0, %v447
      %451 = vst [vmem:[%s448] sm:$0xf] %v449
      %s452 = scalar_lea.vmem %s196, 32
      %s453 = sadd.s32 %s198, 8
      %s454 = ssub.s32 31, %s453
      %p455 = scmp.lt.s32.totalorder %s454, 0
      %s456 = scalar_select %p455, 0, 255
      %s457 = sshrl.u32 %s456, 1
      %s458 = sor.u32 %s456, %s457
      %s459 = sand.u32 %s458, 85
      %s460 = sshrl.u32 %s459, 1
      %s461 = sor.u32 %s459, %s460
      %s462 = sand.u32 51, %s461
      %s463 = sshrl.u32 %s462, 2
      %s464 = sor.u32 %s462, %s463
      %s465 = sand.u32 15, %s464
      %v466 = vld [vmem:[%s452] sm:%s465]
      %v467 = vunpack.c.l.bf16 %v466
      %v468 = vunpack.c.h.bf16 %v466
      %s469 = sadd.s32 %s198, 8
      %s470 = ssub.s32 31, %s469
      %v471 = vstv %s470
      %vm472 = vcmp.lt.s32.totalorder %v471, 0
      %v473 = vsel %vm472, %v9, %v467
      %v474 = vlaneseq
      %v475 = vand.u32 %v474, 127
      %vm477 = vcmp.lt.s32.totalorder %v475, 28
      %v478 = vsel %vm477, %v473, %v9
      %s479 = scalar_lea.vmem [#allocation8], 32
      %v480 = vpack.c.bf16 0.0, %v478
      %482 = vst [vmem:[%s479] sm:$0xf] %v480
      %s483 = scalar_lea.vmem %s196, 36
      %s484 = sadd.s32 %s198, 9
      %s485 = ssub.s32 31, %s484
      %p486 = scmp.lt.s32.totalorder %s485, 0
      %s487 = scalar_select %p486, 0, 255
      %s488 = sshrl.u32 %s487, 1
      %s489 = sor.u32 %s487, %s488
      %s490 = sand.u32 %s489, 85
      %s491 = sshrl.u32 %s490, 1
      %s492 = sor.u32 %s490, %s491
      %s493 = sand.u32 51, %s492
      %s494 = sshrl.u32 %s493, 2
      %s495 = sor.u32 %s493, %s494
      %s496 = sand.u32 15, %s495
      %v497 = vld [vmem:[%s483] sm:%s496]
      %v498 = vunpack.c.l.bf16 %v497
      %v499 = vunpack.c.h.bf16 %v497
      %s500 = sadd.s32 %s198, 9
      %s501 = ssub.s32 31, %s500
      %v502 = vstv %s501
      %vm503 = vcmp.lt.s32.totalorder %v502, 0
      %v504 = vsel %vm503, %v9, %v498
      %v505 = vlaneseq
      %v506 = vand.u32 %v505, 127
      %vm508 = vcmp.lt.s32.totalorder %v506, 28
      %v509 = vsel %vm508, %v504, %v9
      %s510 = scalar_lea.vmem [#allocation8], 36
      %v511 = vpack.c.bf16 0.0, %v509
      %513 = vst [vmem:[%s510] sm:$0xf] %v511
      %s514 = scalar_lea.vmem %s196, 40
      %s515 = sadd.s32 %s198, 10
      %s516 = ssub.s32 31, %s515
      %p517 = scmp.lt.s32.totalorder %s516, 0
      %s518 = scalar_select %p517, 0, 255
      %s519 = sshrl.u32 %s518, 1
      %s520 = sor.u32 %s518, %s519
      %s521 = sand.u32 %s520, 85
      %s522 = sshrl.u32 %s521, 1
      %s523 = sor.u32 %s521, %s522
      %s524 = sand.u32 51, %s523
      %s525 = sshrl.u32 %s524, 2
      %s526 = sor.u32 %s524, %s525
      %s527 = sand.u32 15, %s526
      %v528 = vld [vmem:[%s514] sm:%s527]
      %v529 = vunpack.c.l.bf16 %v528
      %v530 = vunpack.c.h.bf16 %v528
      %s531 = sadd.s32 %s198, 10
      %s532 = ssub.s32 31, %s531
      %v533 = vstv %s532
      %vm534 = vcmp.lt.s32.totalorder %v533, 0
      %v535 = vsel %vm534, %v9, %v529
      %v536 = vlaneseq
      %v537 = vand.u32 %v536, 127
      %vm539 = vcmp.lt.s32.totalorder %v537, 28
      %v540 = vsel %vm539, %v535, %v9
      %s541 = scalar_lea.vmem [#allocation8], 40
      %v542 = vpack.c.bf16 0.0, %v540
      %544 = vst [vmem:[%s541] sm:$0xf] %v542
      %s545 = scalar_lea.vmem %s196, 44
      %s546 = sadd.s32 %s198, 11
      %s547 = ssub.s32 31, %s546
      %p548 = scmp.lt.s32.totalorder %s547, 0
      %s549 = scalar_select %p548, 0, 255
      %s550 = sshrl.u32 %s549, 1
      %s551 = sor.u32 %s549, %s550
      %s552 = sand.u32 %s551, 85
      %s553 = sshrl.u32 %s552, 1
      %s554 = sor.u32 %s552, %s553
      %s555 = sand.u32 51, %s554
      %s556 = sshrl.u32 %s555, 2
      %s557 = sor.u32 %s555, %s556
      %s558 = sand.u32 15, %s557
      %v559 = vld [vmem:[%s545] sm:%s558]
      %v560 = vunpack.c.l.bf16 %v559
      %v561 = vunpack.c.h.bf16 %v559
      %s562 = sadd.s32 %s198, 11
      %s563 = ssub.s32 31, %s562
      %v564 = vstv %s563
      %vm565 = vcmp.lt.s32.totalorder %v564, 0
      %v566 = vsel %vm565, %v9, %v560
      %v567 = vlaneseq
      %v568 = vand.u32 %v567, 127
      %vm570 = vcmp.lt.s32.totalorder %v568, 28
      %v571 = vsel %vm570, %v566, %v9
      %s572 = scalar_lea.vmem [#allocation8], 44
      %v573 = vpack.c.bf16 0.0, %v571
      %575 = vst [vmem:[%s572] sm:$0xf] %v573
      %s576 = scalar_lea.vmem %s196, 48
      %s577 = sadd.s32 %s198, 12
      %s578 = ssub.s32 31, %s577
      %p579 = scmp.lt.s32.totalorder %s578, 0
      %s580 = scalar_select %p579, 0, 255
      %s581 = sshrl.u32 %s580, 1
      %s582 = sor.u32 %s580, %s581
      %s583 = sand.u32 %s582, 85
      %s584 = sshrl.u32 %s583, 1
      %s585 = sor.u32 %s583, %s584
      %s586 = sand.u32 51, %s585
      %s587 = sshrl.u32 %s586, 2
      %s588 = sor.u32 %s586, %s587
      %s589 = sand.u32 15, %s588
      %v590 = vld [vmem:[%s576] sm:%s589]
      %v591 = vunpack.c.l.bf16 %v590
      %v592 = vunpack.c.h.bf16 %v590
      %s593 = sadd.s32 %s198, 12
      %s594 = ssub.s32 31, %s593
      %v595 = vstv %s594
      %vm596 = vcmp.lt.s32.totalorder %v595, 0
      %v597 = vsel %vm596, %v9, %v591
      %v598 = vlaneseq
      %v599 = vand.u32 %v598, 127
      %vm601 = vcmp.lt.s32.totalorder %v599, 28
      %v602 = vsel %vm601, %v597, %v9
      %s603 = scalar_lea.vmem [#allocation8], 48
      %v604 = vpack.c.bf16 0.0, %v602
      %606 = vst [vmem:[%s603] sm:$0xf] %v604
      %s607 = scalar_lea.vmem %s196, 52
      %s608 = sadd.s32 %s198, 13
      %s609 = ssub.s32 31, %s608
      %p610 = scmp.lt.s32.totalorder %s609, 0
      %s611 = scalar_select %p610, 0, 255
      %s612 = sshrl.u32 %s611, 1
      %s613 = sor.u32 %s611, %s612
      %s614 = sand.u32 %s613, 85
      %s615 = sshrl.u32 %s614, 1
      %s616 = sor.u32 %s614, %s615
      %s617 = sand.u32 51, %s616
      %s618 = sshrl.u32 %s617, 2
      %s619 = sor.u32 %s617, %s618
      %s620 = sand.u32 15, %s619
      %v621 = vld [vmem:[%s607] sm:%s620]
      %v622 = vunpack.c.l.bf16 %v621
      %v623 = vunpack.c.h.bf16 %v621
      %s624 = sadd.s32 %s198, 13
      %s625 = ssub.s32 31, %s624
      %v626 = vstv %s625
      %vm627 = vcmp.lt.s32.totalorder %v626, 0
      %v628 = vsel %vm627, %v9, %v622
      %v629 = vlaneseq
      %v630 = vand.u32 %v629, 127
      %vm632 = vcmp.lt.s32.totalorder %v630, 28
      %v633 = vsel %vm632, %v628, %v9
      %s634 = scalar_lea.vmem [#allocation8], 52
      %v635 = vpack.c.bf16 0.0, %v633
      %637 = vst [vmem:[%s634] sm:$0xf] %v635
      %s638 = scalar_lea.vmem %s196, 56
      %s639 = sadd.s32 %s198, 14
      %s640 = ssub.s32 31, %s639
      %p641 = scmp.lt.s32.totalorder %s640, 0
      %s642 = scalar_select %p641, 0, 255
      %s643 = sshrl.u32 %s642, 1
      %s644 = sor.u32 %s642, %s643
      %s645 = sand.u32 %s644, 85
      %s646 = sshrl.u32 %s645, 1
      %s647 = sor.u32 %s645, %s646
      %s648 = sand.u32 51, %s647
      %s649 = sshrl.u32 %s648, 2
      %s650 = sor.u32 %s648, %s649
      %s651 = sand.u32 15, %s650
      %v652 = vld [vmem:[%s638] sm:%s651]
      %v653 = vunpack.c.l.bf16 %v652
      %v654 = vunpack.c.h.bf16 %v652
      %s655 = sadd.s32 %s198, 14
      %s656 = ssub.s32 31, %s655
      %v657 = vstv %s656
      %vm658 = vcmp.lt.s32.totalorder %v657, 0
      %v659 = vsel %vm658, %v9, %v653
      %v660 = vlaneseq
      %v661 = vand.u32 %v660, 127
      %vm663 = vcmp.lt.s32.totalorder %v661, 28
      %v664 = vsel %vm663, %v659, %v9
      %s665 = scalar_lea.vmem [#allocation8], 56
      %v666 = vpack.c.bf16 0.0, %v664
      %668 = vst [vmem:[%s665] sm:$0xf] %v666
      %s669 = scalar_lea.vmem %s196, 60
      %s670 = sadd.s32 %s198, 15
      %s671 = ssub.s32 31, %s670
      %p672 = scmp.lt.s32.totalorder %s671, 0
      %s673 = scalar_select %p672, 0, 255
      %s674 = sshrl.u32 %s673, 1
      %s675 = sor.u32 %s673, %s674
      %s676 = sand.u32 %s675, 85
      %s677 = sshrl.u32 %s676, 1
      %s678 = sor.u32 %s676, %s677
      %s679 = sand.u32 51, %s678
      %s680 = sshrl.u32 %s679, 2
      %s681 = sor.u32 %s679, %s680
      %s682 = sand.u32 15, %s681
      %v683 = vld [vmem:[%s669] sm:%s682]
      %v684 = vunpack.c.l.bf16 %v683
      %v685 = vunpack.c.h.bf16 %v683
      %s686 = sadd.s32 %s198, 15
      %s687 = ssub.s32 31, %s686
      %v688 = vstv %s687
      %vm689 = vcmp.lt.s32.totalorder %v688, 0
      %v690 = vsel %vm689, %v9, %v684
      %v691 = vlaneseq
      %v692 = vand.u32 %v691, 127
      %vm694 = vcmp.lt.s32.totalorder %v692, 28
      %v695 = vsel %vm694, %v690, %v9
      %s696 = scalar_lea.vmem [#allocation8], 60
      %v697 = vpack.c.bf16 0.0, %v695
      %699 = vst [vmem:[%s696] sm:$0xf] %v697
      %s700 = scalar_lea.vmem %s196, 64
      %s701 = sadd.s32 %s198, 16
      %s702 = ssub.s32 31, %s701
      %p703 = scmp.lt.s32.totalorder %s702, 0
      %s704 = scalar_select %p703, 0, 255
      %s705 = sshrl.u32 %s704, 1
      %s706 = sor.u32 %s704, %s705
      %s707 = sand.u32 %s706, 85
      %s708 = sshrl.u32 %s707, 1
      %s709 = sor.u32 %s707, %s708
      %s710 = sand.u32 51, %s709
      %s711 = sshrl.u32 %s710, 2
      %s712 = sor.u32 %s710, %s711
      %s713 = sand.u32 15, %s712
      %v714 = vld [vmem:[%s700] sm:%s713]
      %v715 = vunpack.c.l.bf16 %v714
      %v716 = vunpack.c.h.bf16 %v714
      %s717 = sadd.s32 %s198, 16
      %s718 = ssub.s32 31, %s717
      %v719 = vstv %s718
      %vm720 = vcmp.lt.s32.totalorder %v719, 0
      %v721 = vsel %vm720, %v9, %v715
      %v722 = vlaneseq
      %v723 = vand.u32 %v722, 127
      %vm725 = vcmp.lt.s32.totalorder %v723, 28
      %v726 = vsel %vm725, %v721, %v9
      %s727 = scalar_lea.vmem [#allocation8], 64
      %v728 = vpack.c.bf16 0.0, %v726
      %730 = vst [vmem:[%s727] sm:$0xf] %v728
      %s731 = scalar_lea.vmem %s196, 68
      %s732 = sadd.s32 %s198, 17
      %s733 = ssub.s32 31, %s732
      %p734 = scmp.lt.s32.totalorder %s733, 0
      %s735 = scalar_select %p734, 0, 255
      %s736 = sshrl.u32 %s735, 1
      %s737 = sor.u32 %s735, %s736
      %s738 = sand.u32 %s737, 85
      %s739 = sshrl.u32 %s738, 1
      %s740 = sor.u32 %s738, %s739
      %s741 = sand.u32 51, %s740
      %s742 = sshrl.u32 %s741, 2
      %s743 = sor.u32 %s741, %s742
      %s744 = sand.u32 15, %s743
      %v745 = vld [vmem:[%s731] sm:%s744]
      %v746 = vunpack.c.l.bf16 %v745
      %v747 = vunpack.c.h.bf16 %v745
      %s748 = sadd.s32 %s198, 17
      %s749 = ssub.s32 31, %s748
      %v750 = vstv %s749
      %vm751 = vcmp.lt.s32.totalorder %v750, 0
      %v752 = vsel %vm751, %v9, %v746
      %v753 = vlaneseq
      %v754 = vand.u32 %v753, 127
      %vm756 = vcmp.lt.s32.totalorder %v754, 28
      %v757 = vsel %vm756, %v752, %v9
      %s758 = scalar_lea.vmem [#allocation8], 68
      %v759 = vpack.c.bf16 0.0, %v757
      %761 = vst [vmem:[%s758] sm:$0xf] %v759
      %s762 = scalar_lea.vmem %s196, 72
      %s763 = sadd.s32 %s198, 18
      %s764 = ssub.s32 31, %s763
      %p765 = scmp.lt.s32.totalorder %s764, 0
      %s766 = scalar_select %p765, 0, 255
      %s767 = sshrl.u32 %s766, 1
      %s768 = sor.u32 %s766, %s767
      %s769 = sand.u32 %s768, 85
      %s770 = sshrl.u32 %s769, 1
      %s771 = sor.u32 %s769, %s770
      %s772 = sand.u32 51, %s771
      %s773 = sshrl.u32 %s772, 2
      %s774 = sor.u32 %s772, %s773
      %s775 = sand.u32 15, %s774
      %v776 = vld [vmem:[%s762] sm:%s775]
      %v777 = vunpack.c.l.bf16 %v776
      %v778 = vunpack.c.h.bf16 %v776
      %s779 = sadd.s32 %s198, 18
      %s780 = ssub.s32 31, %s779
      %v781 = vstv %s780
      %vm782 = vcmp.lt.s32.totalorder %v781, 0
      %v783 = vsel %vm782, %v9, %v777
      %v784 = vlaneseq
      %v785 = vand.u32 %v784, 127
      %vm787 = vcmp.lt.s32.totalorder %v785, 28
      %v788 = vsel %vm787, %v783, %v9
      %s789 = scalar_lea.vmem [#allocation8], 72
      %v790 = vpack.c.bf16 0.0, %v788
      %792 = vst [vmem:[%s789] sm:$0xf] %v790
      %s793 = scalar_lea.vmem %s196, 76
      %s794 = sadd.s32 %s198, 19
      %s795 = ssub.s32 31, %s794
      %p796 = scmp.lt.s32.totalorder %s795, 0
      %s797 = scalar_select %p796, 0, 255
      %s798 = sshrl.u32 %s797, 1
      %s799 = sor.u32 %s797, %s798
      %s800 = sand.u32 %s799, 85
      %s801 = sshrl.u32 %s800, 1
      %s802 = sor.u32 %s800, %s801
      %s803 = sand.u32 51, %s802
      %s804 = sshrl.u32 %s803, 2
      %s805 = sor.u32 %s803, %s804
      %s806 = sand.u32 15, %s805
      %v807 = vld [vmem:[%s793] sm:%s806]
      %v808 = vunpack.c.l.bf16 %v807
      %v809 = vunpack.c.h.bf16 %v807
      %s810 = sadd.s32 %s198, 19
      %s811 = ssub.s32 31, %s810
      %v812 = vstv %s811
      %vm813 = vcmp.lt.s32.totalorder %v812, 0
      %v814 = vsel %vm813, %v9, %v808
      %v815 = vlaneseq
      %v816 = vand.u32 %v815, 127
      %vm818 = vcmp.lt.s32.totalorder %v816, 28
      %v819 = vsel %vm818, %v814, %v9
      %s820 = scalar_lea.vmem [#allocation8], 76
      %v821 = vpack.c.bf16 0.0, %v819
      %823 = vst [vmem:[%s820] sm:$0xf] %v821
      %s824 = scalar_lea.vmem %s196, 80
      %s825 = sadd.s32 %s198, 20
      %s826 = ssub.s32 31, %s825
      %p827 = scmp.lt.s32.totalorder %s826, 0
      %s828 = scalar_select %p827, 0, 255
      %s829 = sshrl.u32 %s828, 1
      %s830 = sor.u32 %s828, %s829
      %s831 = sand.u32 %s830, 85
      %s832 = sshrl.u32 %s831, 1
      %s833 = sor.u32 %s831, %s832
      %s834 = sand.u32 51, %s833
      %s835 = sshrl.u32 %s834, 2
      %s836 = sor.u32 %s834, %s835
      %s837 = sand.u32 15, %s836
      %v838 = vld [vmem:[%s824] sm:%s837]
      %v839 = vunpack.c.l.bf16 %v838
      %v840 = vunpack.c.h.bf16 %v838
      %s841 = sadd.s32 %s198, 20
      %s842 = ssub.s32 31, %s841
      %v843 = vstv %s842
      %vm844 = vcmp.lt.s32.totalorder %v843, 0
      %v845 = vsel %vm844, %v9, %v839
      %v846 = vlaneseq
      %v847 = vand.u32 %v846, 127
      %vm849 = vcmp.lt.s32.totalorder %v847, 28
      %v850 = vsel %vm849, %v845, %v9
      %s851 = scalar_lea.vmem [#allocation8], 80
      %v852 = vpack.c.bf16 0.0, %v850
      %854 = vst [vmem:[%s851] sm:$0xf] %v852
      %s855 = scalar_lea.vmem %s196, 84
      %s856 = sadd.s32 %s198, 21
      %s857 = ssub.s32 31, %s856
      %p858 = scmp.lt.s32.totalorder %s857, 0
      %s859 = scalar_select %p858, 0, 255
      %s860 = sshrl.u32 %s859, 1
      %s861 = sor.u32 %s859, %s860
      %s862 = sand.u32 %s861, 85
      %s863 = sshrl.u32 %s862, 1
      %s864 = sor.u32 %s862, %s863
      %s865 = sand.u32 51, %s864
      %s866 = sshrl.u32 %s865, 2
      %s867 = sor.u32 %s865, %s866
      %s868 = sand.u32 15, %s867
      %v869 = vld [vmem:[%s855] sm:%s868]
      %v870 = vunpack.c.l.bf16 %v869
      %v871 = vunpack.c.h.bf16 %v869
      %s872 = sadd.s32 %s198, 21
      %s873 = ssub.s32 31, %s872
      %v874 = vstv %s873
      %vm875 = vcmp.lt.s32.totalorder %v874, 0
      %v876 = vsel %vm875, %v9, %v870
      %v877 = vlaneseq
      %v878 = vand.u32 %v877, 127
      %vm880 = vcmp.lt.s32.totalorder %v878, 28
      %v881 = vsel %vm880, %v876, %v9
      %s882 = scalar_lea.vmem [#allocation8], 84
      %v883 = vpack.c.bf16 0.0, %v881
      %885 = vst [vmem:[%s882] sm:$0xf] %v883
      %s886 = scalar_lea.vmem %s196, 88
      %s887 = sadd.s32 %s198, 22
      %s888 = ssub.s32 31, %s887
      %p889 = scmp.lt.s32.totalorder %s888, 0
      %s890 = scalar_select %p889, 0, 255
      %s891 = sshrl.u32 %s890, 1
      %s892 = sor.u32 %s890, %s891
      %s893 = sand.u32 %s892, 85
      %s894 = sshrl.u32 %s893, 1
      %s895 = sor.u32 %s893, %s894
      %s896 = sand.u32 51, %s895
      %s897 = sshrl.u32 %s896, 2
      %s898 = sor.u32 %s896, %s897
      %s899 = sand.u32 15, %s898
      %v900 = vld [vmem:[%s886] sm:%s899]
      %v901 = vunpack.c.l.bf16 %v900
      %v902 = vunpack.c.h.bf16 %v900
      %s903 = sadd.s32 %s198, 22
      %s904 = ssub.s32 31, %s903
      %v905 = vstv %s904
      %vm906 = vcmp.lt.s32.totalorder %v905, 0
      %v907 = vsel %vm906, %v9, %v901
      %v908 = vlaneseq
      %v909 = vand.u32 %v908, 127
      %vm911 = vcmp.lt.s32.totalorder %v909, 28
      %v912 = vsel %vm911, %v907, %v9
      %s913 = scalar_lea.vmem [#allocation8], 88
      %v914 = vpack.c.bf16 0.0, %v912
      %916 = vst [vmem:[%s913] sm:$0xf] %v914
      %s917 = scalar_lea.vmem %s196, 92
      %s918 = sadd.s32 %s198, 23
      %s919 = ssub.s32 31, %s918
      %p920 = scmp.lt.s32.totalorder %s919, 0
      %s921 = scalar_select %p920, 0, 255
      %s922 = sshrl.u32 %s921, 1
      %s923 = sor.u32 %s921, %s922
      %s924 = sand.u32 %s923, 85
      %s925 = sshrl.u32 %s924, 1
      %s926 = sor.u32 %s924, %s925
      %s927 = sand.u32 51, %s926
      %s928 = sshrl.u32 %s927, 2
      %s929 = sor.u32 %s927, %s928
      %s930 = sand.u32 15, %s929
      %v931 = vld [vmem:[%s917] sm:%s930]
      %v932 = vunpack.c.l.bf16 %v931
      %v933 = vunpack.c.h.bf16 %v931
      %s934 = sadd.s32 %s198, 23
      %s935 = ssub.s32 31, %s934
      %v936 = vstv %s935
      %vm937 = vcmp.lt.s32.totalorder %v936, 0
      %v938 = vsel %vm937, %v9, %v932
      %v939 = vlaneseq
      %v940 = vand.u32 %v939, 127
      %vm942 = vcmp.lt.s32.totalorder %v940, 28
      %v943 = vsel %vm942, %v938, %v9
      %s944 = scalar_lea.vmem [#allocation8], 92
      %v945 = vpack.c.bf16 0.0, %v943
      %947 = vst [vmem:[%s944] sm:$0xf] %v945
      %s948 = scalar_lea.vmem %s196, 96
      %s949 = sadd.s32 %s198, 24
      %s950 = ssub.s32 31, %s949
      %p951 = scmp.lt.s32.totalorder %s950, 0
      %s952 = scalar_select %p951, 0, 255
      %s953 = sshrl.u32 %s952, 1
      %s954 = sor.u32 %s952, %s953
      %s955 = sand.u32 %s954, 85
      %s956 = sshrl.u32 %s955, 1
      %s957 = sor.u32 %s955, %s956
      %s958 = sand.u32 51, %s957
      %s959 = sshrl.u32 %s958, 2
      %s960 = sor.u32 %s958, %s959
      %s961 = sand.u32 15, %s960
      %v962 = vld [vmem:[%s948] sm:%s961]
      %v963 = vunpack.c.l.bf16 %v962
      %v964 = vunpack.c.h.bf16 %v962
      %s965 = sadd.s32 %s198, 24
      %s966 = ssub.s32 31, %s965
      %v967 = vstv %s966
      %vm968 = vcmp.lt.s32.totalorder %v967, 0
      %v969 = vsel %vm968, %v9, %v963
      %v970 = vlaneseq
      %v971 = vand.u32 %v970, 127
      %vm973 = vcmp.lt.s32.totalorder %v971, 28
      %v974 = vsel %vm973, %v969, %v9
      %s975 = scalar_lea.vmem [#allocation8], 96
      %v976 = vpack.c.bf16 0.0, %v974
      %978 = vst [vmem:[%s975] sm:$0xf] %v976
      %s979 = scalar_lea.vmem %s196, 100
      %s980 = sadd.s32 %s198, 25
      %s981 = ssub.s32 31, %s980
      %p982 = scmp.lt.s32.totalorder %s981, 0
      %s983 = scalar_select %p982, 0, 255
      %s984 = sshrl.u32 %s983, 1
      %s985 = sor.u32 %s983, %s984
      %s986 = sand.u32 %s985, 85
      %s987 = sshrl.u32 %s986, 1
      %s988 = sor.u32 %s986, %s987
      %s989 = sand.u32 51, %s988
      %s990 = sshrl.u32 %s989, 2
      %s991 = sor.u32 %s989, %s990
      %s992 = sand.u32 15, %s991
      %v993 = vld [vmem:[%s979] sm:%s992]
      %v994 = vunpack.c.l.bf16 %v993
      %v995 = vunpack.c.h.bf16 %v993
      %s996 = sadd.s32 %s198, 25
      %s997 = ssub.s32 31, %s996
      %v998 = vstv %s997
      %vm999 = vcmp.lt.s32.totalorder %v998, 0
      %v1000 = vsel %vm999, %v9, %v994
      %v1001 = vlaneseq
      %v1002 = vand.u32 %v1001, 127
      %vm1004 = vcmp.lt.s32.totalorder %v1002, 28
      %v1005 = vsel %vm1004, %v1000, %v9
      %s1006 = scalar_lea.vmem [#allocation8], 100
      %v1007 = vpack.c.bf16 0.0, %v1005
      %1009 = vst [vmem:[%s1006] sm:$0xf] %v1007
      %s1010 = scalar_lea.vmem %s196, 104
      %s1011 = sadd.s32 %s198, 26
      %s1012 = ssub.s32 31, %s1011
      %p1013 = scmp.lt.s32.totalorder %s1012, 0
      %s1014 = scalar_select %p1013, 0, 255
      %s1015 = sshrl.u32 %s1014, 1
      %s1016 = sor.u32 %s1014, %s1015
      %s1017 = sand.u32 %s1016, 85
      %s1018 = sshrl.u32 %s1017, 1
      %s1019 = sor.u32 %s1017, %s1018
      %s1020 = sand.u32 51, %s1019
      %s1021 = sshrl.u32 %s1020, 2
      %s1022 = sor.u32 %s1020, %s1021
      %s1023 = sand.u32 15, %s1022
      %v1024 = vld [vmem:[%s1010] sm:%s1023]
      %v1025 = vunpack.c.l.bf16 %v1024
      %v1026 = vunpack.c.h.bf16 %v1024
      %s1027 = sadd.s32 %s198, 26
      %s1028 = ssub.s32 31, %s1027
      %v1029 = vstv %s1028
      %vm1030 = vcmp.lt.s32.totalorder %v1029, 0
      %v1031 = vsel %vm1030, %v9, %v1025
      %v1032 = vlaneseq
      %v1033 = vand.u32 %v1032, 127
      %vm1035 = vcmp.lt.s32.totalorder %v1033, 28
      %v1036 = vsel %vm1035, %v1031, %v9
      %s1037 = scalar_lea.vmem [#allocation8], 104
      %v1038 = vpack.c.bf16 0.0, %v1036
      %1040 = vst [vmem:[%s1037] sm:$0xf] %v1038
      %s1041 = scalar_lea.vmem %s196, 108
      %s1042 = sadd.s32 %s198, 27
      %s1043 = ssub.s32 31, %s1042
      %p1044 = scmp.lt.s32.totalorder %s1043, 0
      %s1045 = scalar_select %p1044, 0, 255
      %s1046 = sshrl.u32 %s1045, 1
      %s1047 = sor.u32 %s1045, %s1046
      %s1048 = sand.u32 %s1047, 85
      %s1049 = sshrl.u32 %s1048, 1
      %s1050 = sor.u32 %s1048, %s1049
      %s1051 = sand.u32 51, %s1050
      %s1052 = sshrl.u32 %s1051, 2
      %s1053 = sor.u32 %s1051, %s1052
      %s1054 = sand.u32 15, %s1053
      %v1055 = vld [vmem:[%s1041] sm:%s1054]
      %v1056 = vunpack.c.l.bf16 %v1055
      %v1057 = vunpack.c.h.bf16 %v1055
      %s1058 = sadd.s32 %s198, 27
      %s1059 = ssub.s32 31, %s1058
      %v1060 = vstv %s1059
      %vm1061 = vcmp.lt.s32.totalorder %v1060, 0
      %v1062 = vsel %vm1061, %v9, %v1056
      %v1063 = vlaneseq
      %v1064 = vand.u32 %v1063, 127
      %vm1066 = vcmp.lt.s32.totalorder %v1064, 28
      %v1067 = vsel %vm1066, %v1062, %v9
      %s1068 = scalar_lea.vmem [#allocation8], 108
      %v1069 = vpack.c.bf16 0.0, %v1067
      %1071 = vst [vmem:[%s1068] sm:$0xf] %v1069
      %s1072 = scalar_lea.vmem %s196, 112
      %s1073 = sadd.s32 %s198, 28
      %s1074 = ssub.s32 31, %s1073
      %p1075 = scmp.lt.s32.totalorder %s1074, 0
      %s1076 = scalar_select %p1075, 0, 255
      %s1077 = sshrl.u32 %s1076, 1
      %s1078 = sor.u32 %s1076, %s1077
      %s1079 = sand.u32 %s1078, 85
      %s1080 = sshrl.u32 %s1079, 1
      %s1081 = sor.u32 %s1079, %s1080
      %s1082 = sand.u32 51, %s1081
      %s1083 = sshrl.u32 %s1082, 2
      %s1084 = sor.u32 %s1082, %s1083
      %s1085 = sand.u32 15, %s1084
      %v1086 = vld [vmem:[%s1072] sm:%s1085]
      %v1087 = vunpack.c.l.bf16 %v1086
      %v1088 = vunpack.c.h.bf16 %v1086
      %s1089 = sadd.s32 %s198, 28
      %s1090 = ssub.s32 31, %s1089
      %v1091 = vstv %s1090
      %vm1092 = vcmp.lt.s32.totalorder %v1091, 0
      %v1093 = vsel %vm1092, %v9, %v1087
      %v1094 = vlaneseq
      %v1095 = vand.u32 %v1094, 127
      %vm1097 = vcmp.lt.s32.totalorder %v1095, 28
      %v1098 = vsel %vm1097, %v1093, %v9
      %s1099 = scalar_lea.vmem [#allocation8], 112
      %v1100 = vpack.c.bf16 0.0, %v1098
      %1102 = vst [vmem:[%s1099] sm:$0xf] %v1100
      %s1103 = scalar_lea.vmem %s196, 116
      %s1104 = sadd.s32 %s198, 29
      %s1105 = ssub.s32 31, %s1104
      %p1106 = scmp.lt.s32.totalorder %s1105, 0
      %s1107 = scalar_select %p1106, 0, 255
      %s1108 = sshrl.u32 %s1107, 1
      %s1109 = sor.u32 %s1107, %s1108
      %s1110 = sand.u32 %s1109, 85
      %s1111 = sshrl.u32 %s1110, 1
      %s1112 = sor.u32 %s1110, %s1111
      %s1113 = sand.u32 51, %s1112
      %s1114 = sshrl.u32 %s1113, 2
      %s1115 = sor.u32 %s1113, %s1114
      %s1116 = sand.u32 15, %s1115
      %v1117 = vld [vmem:[%s1103] sm:%s1116]
      %v1118 = vunpack.c.l.bf16 %v1117
      %v1119 = vunpack.c.h.bf16 %v1117
      %s1120 = sadd.s32 %s198, 29
      %s1121 = ssub.s32 31, %s1120
      %v1122 = vstv %s1121
      %vm1123 = vcmp.lt.s32.totalorder %v1122, 0
      %v1124 = vsel %vm1123, %v9, %v1118
      %v1125 = vlaneseq
      %v1126 = vand.u32 %v1125, 127
      %vm1128 = vcmp.lt.s32.totalorder %v1126, 28
      %v1129 = vsel %vm1128, %v1124, %v9
      %s1130 = scalar_lea.vmem [#allocation8], 116
      %v1131 = vpack.c.bf16 0.0, %v1129
      %1133 = vst [vmem:[%s1130] sm:$0xf] %v1131
      %s1134 = scalar_lea.vmem %s196, 120
      %s1135 = sadd.s32 %s198, 30
      %s1136 = ssub.s32 31, %s1135
      %p1137 = scmp.lt.s32.totalorder %s1136, 0
      %s1138 = scalar_select %p1137, 0, 255
      %s1139 = sshrl.u32 %s1138, 1
      %s1140 = sor.u32 %s1138, %s1139
      %s1141 = sand.u32 %s1140, 85
      %s1142 = sshrl.u32 %s1141, 1
      %s1143 = sor.u32 %s1141, %s1142
      %s1144 = sand.u32 51, %s1143
      %s1145 = sshrl.u32 %s1144, 2
      %s1146 = sor.u32 %s1144, %s1145
      %s1147 = sand.u32 15, %s1146
      %v1148 = vld [vmem:[%s1134] sm:%s1147]
      %v1149 = vunpack.c.l.bf16 %v1148
      %v1150 = vunpack.c.h.bf16 %v1148
      %s1151 = sadd.s32 %s198, 30
      %s1152 = ssub.s32 31, %s1151
      %v1153 = vstv %s1152
      %vm1154 = vcmp.lt.s32.totalorder %v1153, 0
      %v1155 = vsel %vm1154, %v9, %v1149
      %v1156 = vlaneseq
      %v1157 = vand.u32 %v1156, 127
      %vm1159 = vcmp.lt.s32.totalorder %v1157, 28
      %v1160 = vsel %vm1159, %v1155, %v9
      %s1161 = scalar_lea.vmem [#allocation8], 120
      %v1162 = vpack.c.bf16 0.0, %v1160
      %1164 = vst [vmem:[%s1161] sm:$0xf] %v1162
      %s1165 = scalar_lea.vmem %s196, 124
      %s1166 = sadd.s32 %s198, 31
      %s1167 = ssub.s32 31, %s1166
      %p1168 = scmp.lt.s32.totalorder %s1167, 0
      %s1169 = scalar_select %p1168, 0, 255
      %s1170 = sshrl.u32 %s1169, 1
      %s1171 = sor.u32 %s1169, %s1170
      %s1172 = sand.u32 %s1171, 85
      %s1173 = sshrl.u32 %s1172, 1
      %s1174 = sor.u32 %s1172, %s1173
      %s1175 = sand.u32 51, %s1174
      %s1176 = sshrl.u32 %s1175, 2
      %s1177 = sor.u32 %s1175, %s1176
      %s1178 = sand.u32 15, %s1177
      %v1179 = vld [vmem:[%s1165] sm:%s1178]
      %v1180 = vunpack.c.l.bf16 %v1179
      %v1181 = vunpack.c.h.bf16 %v1179
      %s1182 = sadd.s32 %s198, 31
      %s1183 = ssub.s32 31, %s1182
      %v1184 = vstv %s1183
      %vm1185 = vcmp.lt.s32.totalorder %v1184, 0
      %v1186 = vsel %vm1185, %v9, %v1180
      %v1187 = vlaneseq
      %v1188 = vand.u32 %v1187, 127
      %vm1190 = vcmp.lt.s32.totalorder %v1188, 28
      %v1191 = vsel %vm1190, %v1186, %v9
      %s1192 = scalar_lea.vmem [#allocation8], 124
      %v1193 = vpack.c.bf16 0.0, %v1191
      %1195 = vst [vmem:[%s1192] sm:$0xf] %v1193
      %p1197 = scmp.eq.s32.totalorder %s26, 0
      // Predicated region
      $region29: #{_pretrain_forward.2} parent=27 // pred_check
        %p1198 = pneg %p1197
      $region30: #{_pretrain_forward.2} parent=27 // pred_check_branch
        %1200 = sbr.rel (%p1198) target = $region32
      $region31: #{_pretrain_forward.2} parent=27 // pred_region
        %1201 = vst [vmem:[#allocation2] sm:$0xff] 0.0
      $region32: #{_pretrain_forward.2} parent=27 // pred_fallthru
        _
      %v1202 = vld [vmem:[#allocation8] sm:$0xf]
      %v1203 = vld [vmem:[#allocation8 + $0x4] sm:$0xf]
      %v1204 = vld [vmem:[#allocation8 + $0x8] sm:$0xf]
      %v1205 = vld [vmem:[#allocation8 + $0xc] sm:$0xf]
      %v1206 = vld [vmem:[#allocation8 + $0x10] sm:$0xf]
      %v1207 = vld [vmem:[#allocation8 + $0x14] sm:$0xf]
      %v1208 = vld [vmem:[#allocation8 + $0x18] sm:$0xf]
      %v1209 = vld [vmem:[#allocation8 + $0x1c] sm:$0xf]
      %v1210 = vld [vmem:[#allocation8 + $0x20] sm:$0xf]
      %v1211 = vld [vmem:[#allocation8 + $0x24] sm:$0xf]
      %v1212 = vld [vmem:[#allocation8 + $0x28] sm:$0xf]
      %v1213 = vld [vmem:[#allocation8 + $0x2c] sm:$0xf]
      %v1214 = vld [vmem:[#allocation8 + $0x30] sm:$0xf]
      %v1215 = vld [vmem:[#allocation8 + $0x34] sm:$0xf]
      %v1216 = vld [vmem:[#allocation8 + $0x38] sm:$0xf]
      %v1217 = vld [vmem:[#allocation8 + $0x3c] sm:$0xf]
      %v1218 = vld [vmem:[#allocation8 + $0x40] sm:$0xf]
      %v1219 = vld [vmem:[#allocation8 + $0x44] sm:$0xf]
      %v1220 = vld [vmem:[#allocation8 + $0x48] sm:$0xf]
      %v1221 = vld [vmem:[#allocation8 + $0x4c] sm:$0xf]
      %v1222 = vld [vmem:[#allocation8 + $0x50] sm:$0xf]
      %v1223 = vld [vmem:[#allocation8 + $0x54] sm:$0xf]
      %v1224 = vld [vmem:[#allocation8 + $0x58] sm:$0xf]
      %v1225 = vld [vmem:[#allocation8 + $0x5c] sm:$0xf]
      %v1226 = vld [vmem:[#allocation8 + $0x60] sm:$0xf]
      %v1227 = vld [vmem:[#allocation8 + $0x64] sm:$0xf]
      %v1228 = vld [vmem:[#allocation8 + $0x68] sm:$0xf]
      %v1229 = vld [vmem:[#allocation8 + $0x6c] sm:$0xf]
      %v1230 = vld [vmem:[#allocation8 + $0x70] sm:$0xf]
      %v1231 = vld [vmem:[#allocation8 + $0x74] sm:$0xf]
      %v1232 = vld [vmem:[#allocation8 + $0x78] sm:$0xf]
      %v1233 = vld [vmem:[#allocation8 + $0x7c] sm:$0xf]
      %v1234 = vld [vmem:[%s0] sm:$0xf]
      %v1235 = vld [vmem:[%s0 + $0x4] sm:$0xf]
      %v1236 = vld [vmem:[%s0 + $0x8] sm:$0xf]
      %v1237 = vld [vmem:[%s0 + $0xc] sm:$0x3]
      %v1270 = vunpack.c.l.b16 %v1202
      %v1271 = vunpack.c.l.b16 %v1203
      %v1272 = vunpack.c.l.b16 %v1204
      %v1273 = vunpack.c.l.b16 %v1205
      %v1274 = vunpack.c.l.b16 %v1206
      %v1275 = vunpack.c.l.b16 %v1207
      %v1276 = vunpack.c.l.b16 %v1208
      %v1277 = vunpack.c.l.b16 %v1209
      %v1278 = vunpack.c.l.b16 %v1210
      %v1279 = vunpack.c.l.b16 %v1211
      %v1280 = vunpack.c.l.b16 %v1212
      %v1281 = vunpack.c.l.b16 %v1213
      %v1282 = vunpack.c.l.b16 %v1214
      %v1283 = vunpack.c.l.b16 %v1215
      %v1284 = vunpack.c.l.b16 %v1216
      %v1285 = vunpack.c.l.b16 %v1217
      %v1286 = vunpack.c.l.b16 %v1218
      %v1287 = vunpack.c.l.b16 %v1219
      %v1288 = vunpack.c.l.b16 %v1220
      %v1289 = vunpack.c.l.b16 %v1221
      %v1290 = vunpack.c.l.b16 %v1222
      %v1291 = vunpack.c.l.b16 %v1223
      %v1292 = vunpack.c.l.b16 %v1224
      %v1293 = vunpack.c.l.b16 %v1225
      %v1294 = vunpack.c.l.b16 %v1226
      %v1295 = vunpack.c.l.b16 %v1227
      %v1296 = vunpack.c.l.b16 %v1228
      %v1297 = vunpack.c.l.b16 %v1229
      %v1298 = vunpack.c.l.b16 %v1230
      %v1299 = vunpack.c.l.b16 %v1231
      %v1300 = vunpack.c.l.b16 %v1232
      %v1301 = vunpack.c.l.b16 %v1233
      %v1302 = vpack.c.b16 %v1271, %v1270
      %v1303 = vpack.c.b16 %v1273, %v1272
      %v1304 = vpack.c.b16 %v1275, %v1274
      %v1305 = vpack.c.b16 %v1277, %v1276
      %v1306 = vpack.c.b16 %v1279, %v1278
      %v1307 = vpack.c.b16 %v1281, %v1280
      %v1308 = vpack.c.b16 %v1283, %v1282
      %v1309 = vpack.c.b16 %v1285, %v1284
      %v1310 = vpack.c.b16 %v1287, %v1286
      %v1311 = vpack.c.b16 %v1289, %v1288
      %v1312 = vpack.c.b16 %v1291, %v1290
      %v1313 = vpack.c.b16 %v1293, %v1292
      %v1314 = vpack.c.b16 %v1295, %v1294
      %v1315 = vpack.c.b16 %v1297, %v1296
      %v1316 = vpack.c.b16 %v1299, %v1298
      %v1317 = vpack.c.b16 %v1301, %v1300
      %v1322 = vunpack.c.l.b16 %v1234
      %v1323 = vunpack.c.l.b16 %v1235
      %v1324 = vunpack.c.l.b16 %v1236
      %v1325 = vunpack.c.l.b16 %v1237
      %v1326 = vpack.c.b16 %v1323, %v1322
      %v1327 = vpack.c.b16 %v1325, %v1324
      %vm1329 = vcmask 228352
      %v1331 = vsel %vm1329, %v1302, 0
      %v1334 = vsel %vm1329, %v1303, 0
      %v1337 = vsel %vm1329, %v1304, 0
      %v1340 = vsel %vm1329, %v1305, 0
      %v1343 = vsel %vm1329, %v1306, 0
      %v1346 = vsel %vm1329, %v1307, 0
      %v1349 = vsel %vm1329, %v1308, 0
      %v1352 = vsel %vm1329, %v1309, 0
      %v1355 = vsel %vm1329, %v1310, 0
      %v1358 = vsel %vm1329, %v1311, 0
      %v1361 = vsel %vm1329, %v1312, 0
      %v1364 = vsel %vm1329, %v1313, 0
      %v1367 = vsel %vm1329, %v1314, 0
      %v1370 = vsel %vm1329, %v1315, 0
      %v1373 = vsel %vm1329, %v1316, 0
      %v1376 = vsel %vm1329, %v1317, 0
      %vm1378 = vcmask 1045504
      %v1380 = vsel %vm1378, %v1327, 0
      %1382 = vmatprep.subr.bf16.mxu0 0
      %1383 = vmatpush1.bf16.msra.mxu0 %v1326
      %1384 = vmatprep.subr.bf16.mxu0 0
      %1385 = vmatpush1.bf16.msra.mxu0 %v1380
      %1386 = vmatprep.subr.bf16.mxu0 0
      %1387 = vmatpush1.bf16.msra.mxu0 0
      %1388 = vmatprep.subr.bf16.mxu0 0
      %1389 = vmatpush1.bf16.msra.mxu0 0
      %1390 = vmatprep.subr.bf16.mxu0 0
      %1391 = vmatpush1.bf16.msra.mxu0 0
      %1392 = vmatprep.subr.bf16.mxu0 0
      %1393 = vmatpush1.bf16.msra.mxu0 0
      %1394 = vmatprep.subr.bf16.mxu0 0
      %1395 = vmatpush1.bf16.msra.mxu0 0
      %1396 = vmatprep.subr.bf16.mxu0 0
      %1397 = vmatpush1.bf16.msra.mxu0 0
      %1398 = vmatprep.subr.bf16.mxu0 0
      %1399 = vmatpush1.bf16.msra.mxu0 0
      %1400 = vmatprep.subr.bf16.mxu0 0
      %1401 = vmatpush1.bf16.msra.mxu0 0
      %1402 = vmatprep.subr.bf16.mxu0 0
      %1403 = vmatpush1.bf16.msra.mxu0 0
      %1404 = vmatprep.subr.bf16.mxu0 0
      %1405 = vmatpush1.bf16.msra.mxu0 0
      %1406 = vmatprep.subr.bf16.mxu0 0
      %1407 = vmatpush1.bf16.msra.mxu0 0
      %1408 = vmatprep.subr.bf16.mxu0 0
      %1409 = vmatpush1.bf16.msra.mxu0 0
      %1410 = vmatprep.subr.bf16.mxu0 0
      %1411 = vmatpush1.bf16.msra.mxu0 0
      %1412 = vmatprep.subr.bf16.mxu0 0
      %1413 = vmatpush1.bf16.msra.mxu0 0
      %1414 = vmatprep.mubr.bf16.mxu0 0
      %1415 = vmatmul.mubr.bf16.gmra.mrb[0].mxu0 %v1331
      %v1416 = vpop.f32.mrb[0].mxu0
      %v1417 = vadd.f32 0.0, %v1416
      %v1418 = vpop.f32.mrb[0].mxu0
      %v1419 = vpop.f32.mrb[0].mxu0
      %v1420 = vadd.f32 0.0, %v1419
      %v1421 = vpop.f32.mrb[0].mxu0
      %1422 = vmatprep.mubr.bf16.mxu0 0
      %1423 = vmatmul.mubr.bf16.gmra.mrb[0].mxu0 %v1334
      %v1424 = vpop.f32.mrb[0].mxu0
      %v1425 = vadd.f32 0.0, %v1424
      %v1426 = vpop.f32.mrb[0].mxu0
      %v1427 = vpop.f32.mrb[0].mxu0
      %v1428 = vadd.f32 0.0, %v1427
      %v1429 = vpop.f32.mrb[0].mxu0
      %1430 = vmatprep.mubr.bf16.mxu0 0
      %1431 = vmatmul.mubr.bf16.gmra.mrb[0].mxu0 %v1337
      %v1432 = vpop.f32.mrb[0].mxu0
      %v1433 = vadd.f32 0.0, %v1432
      %v1434 = vpop.f32.mrb[0].mxu0
      %v1435 = vpop.f32.mrb[0].mxu0
      %v1436 = vadd.f32 0.0, %v1435
      %v1437 = vpop.f32.mrb[0].mxu0
      %1438 = vmatprep.mubr.bf16.mxu0 0
      %1439 = vmatmul.mubr.bf16.gmra.mrb[0].mxu0 %v1340
      %v1440 = vpop.f32.mrb[0].mxu0
      %v1441 = vadd.f32 0.0, %v1440
      %v1442 = vpop.f32.mrb[0].mxu0
      %v1443 = vpop.f32.mrb[0].mxu0
      %v1444 = vadd.f32 0.0, %v1443
      %v1445 = vpop.f32.mrb[0].mxu0
      %1446 = vmatprep.mubr.bf16.mxu0 0
      %1447 = vmatmul.mubr.bf16.gmra.mrb[0].mxu0 %v1343
      %v1448 = vpop.f32.mrb[0].mxu0
      %v1449 = vadd.f32 0.0, %v1448
      %v1450 = vpop.f32.mrb[0].mxu0
      %v1451 = vpop.f32.mrb[0].mxu0
      %v1452 = vadd.f32 0.0, %v1451
      %v1453 = vpop.f32.mrb[0].mxu0
      %1454 = vmatprep.mubr.bf16.mxu0 0
      %1455 = vmatmul.mubr.bf16.gmra.mrb[0].mxu0 %v1346
      %v1456 = vpop.f32.mrb[0].mxu0
      %v1457 = vadd.f32 0.0, %v1456
      %v1458 = vpop.f32.mrb[0].mxu0
      %v1459 = vpop.f32.mrb[0].mxu0
      %v1460 = vadd.f32 0.0, %v1459
      %v1461 = vpop.f32.mrb[0].mxu0
      %1462 = vmatprep.mubr.bf16.mxu0 0
      %1463 = vmatmul.mubr.bf16.gmra.mrb[0].mxu0 %v1349
      %v1464 = vpop.f32.mrb[0].mxu0
      %v1465 = vadd.f32 0.0, %v1464
      %v1466 = vpop.f32.mrb[0].mxu0
      %v1467 = vpop.f32.mrb[0].mxu0
      %v1468 = vadd.f32 0.0, %v1467
      %v1469 = vpop.f32.mrb[0].mxu0
      %1470 = vmatprep.mubr.bf16.mxu0 0
      %1471 = vmatmul.mubr.bf16.gmra.mrb[0].mxu0 %v1352
      %v1472 = vpop.f32.mrb[0].mxu0
      %v1473 = vadd.f32 0.0, %v1472
      %v1474 = vpop.f32.mrb[0].mxu0
      %v1475 = vpop.f32.mrb[0].mxu0
      %v1476 = vadd.f32 0.0, %v1475
      %v1477 = vpop.f32.mrb[0].mxu0
      %1478 = vmatprep.mubr.bf16.mxu0 0
      %1479 = vmatmul.mubr.bf16.gmra.mrb[0].mxu0 %v1355
      %v1480 = vpop.f32.mrb[0].mxu0
      %v1481 = vadd.f32 0.0, %v1480
      %v1482 = vpop.f32.mrb[0].mxu0
      %v1483 = vpop.f32.mrb[0].mxu0
      %v1484 = vadd.f32 0.0, %v1483
      %v1485 = vpop.f32.mrb[0].mxu0
      %1486 = vmatprep.mubr.bf16.mxu0 0
      %1487 = vmatmul.mubr.bf16.gmra.mrb[0].mxu0 %v1358
      %v1488 = vpop.f32.mrb[0].mxu0
      %v1489 = vadd.f32 0.0, %v1488
      %v1490 = vpop.f32.mrb[0].mxu0
      %v1491 = vpop.f32.mrb[0].mxu0
      %v1492 = vadd.f32 0.0, %v1491
      %v1493 = vpop.f32.mrb[0].mxu0
      %1494 = vmatprep.mubr.bf16.mxu0 0
      %1495 = vmatmul.mubr.bf16.gmra.mrb[0].mxu0 %v1361
      %v1496 = vpop.f32.mrb[0].mxu0
      %v1497 = vadd.f32 0.0, %v1496
      %v1498 = vpop.f32.mrb[0].mxu0
      %v1499 = vpop.f32.mrb[0].mxu0
      %v1500 = vadd.f32 0.0, %v1499
      %v1501 = vpop.f32.mrb[0].mxu0
      %1502 = vmatprep.mubr.bf16.mxu0 0
      %1503 = vmatmul.mubr.bf16.gmra.mrb[0].mxu0 %v1364
      %v1504 = vpop.f32.mrb[0].mxu0
      %v1505 = vadd.f32 0.0, %v1504
      %v1506 = vpop.f32.mrb[0].mxu0
      %v1507 = vpop.f32.mrb[0].mxu0
      %v1508 = vadd.f32 0.0, %v1507
      %v1509 = vpop.f32.mrb[0].mxu0
      %1510 = vmatprep.mubr.bf16.mxu0 0
      %1511 = vmatmul.mubr.bf16.gmra.mrb[0].mxu0 %v1367
      %v1512 = vpop.f32.mrb[0].mxu0
      %v1513 = vadd.f32 0.0, %v1512
      %v1514 = vpop.f32.mrb[0].mxu0
      %v1515 = vpop.f32.mrb[0].mxu0
      %v1516 = vadd.f32 0.0, %v1515
      %v1517 = vpop.f32.mrb[0].mxu0
      %1518 = vmatprep.mubr.bf16.mxu0 0
      %1519 = vmatmul.mubr.bf16.gmra.mrb[0].mxu0 %v1370
      %v1520 = vpop.f32.mrb[0].mxu0
      %v1521 = vadd.f32 0.0, %v1520
      %v1522 = vpop.f32.mrb[0].mxu0
      %v1523 = vpop.f32.mrb[0].mxu0
      %v1524 = vadd.f32 0.0, %v1523
      %v1525 = vpop.f32.mrb[0].mxu0
      %1526 = vmatprep.mubr.bf16.mxu0 0
      %1527 = vmatmul.mubr.bf16.gmra.mrb[0].mxu0 %v1373
      %v1528 = vpop.f32.mrb[0].mxu0
      %v1529 = vadd.f32 0.0, %v1528
      %v1530 = vpop.f32.mrb[0].mxu0
      %v1531 = vpop.f32.mrb[0].mxu0
      %v1532 = vadd.f32 0.0, %v1531
      %v1533 = vpop.f32.mrb[0].mxu0
      %1534 = vmatprep.mubr.bf16.mxu0 0
      %1535 = vmatmul.mubr.bf16.gmra.mrb[0].mxu0 %v1376
      %v1536 = vpop.f32.mrb[0].mxu0
      %v1537 = vadd.f32 0.0, %v1536
      %v1538 = vpop.f32.mrb[0].mxu0
      %v1539 = vpop.f32.mrb[0].mxu0
      %v1540 = vadd.f32 0.0, %v1539
      %v1541 = vpop.f32.mrb[0].mxu0
      %1542 = vdwg.mxu0
      %v1543 = vmax.f32 %v1417, 0.0
      %v1544 = vmax.f32 %v1420, 0.0
      %v1545 = vmax.f32 %v1425, 0.0
      %v1546 = vmax.f32 %v1428, 0.0
      %v1547 = vmax.f32 %v1433, 0.0
      %v1548 = vmax.f32 %v1436, 0.0
      %v1549 = vmax.f32 %v1441, 0.0
      %v1550 = vmax.f32 %v1444, 0.0
      %v1551 = vmax.f32 %v1449, 0.0
      %v1552 = vmax.f32 %v1452, 0.0
      %v1553 = vmax.f32 %v1457, 0.0
      %v1554 = vmax.f32 %v1460, 0.0
      %v1555 = vmax.f32 %v1465, 0.0
      %v1556 = vmax.f32 %v1468, 0.0
      %v1557 = vmax.f32 %v1473, 0.0
      %v1558 = vmax.f32 %v1476, 0.0
      %v1559 = vmax.f32 %v1481, 0.0
      %v1560 = vmax.f32 %v1484, 0.0
      %v1561 = vmax.f32 %v1489, 0.0
      %v1562 = vmax.f32 %v1492, 0.0
      %v1563 = vmax.f32 %v1497, 0.0
      %v1564 = vmax.f32 %v1500, 0.0
      %v1565 = vmax.f32 %v1505, 0.0
      %v1566 = vmax.f32 %v1508, 0.0
      %v1567 = vmax.f32 %v1513, 0.0
      %v1568 = vmax.f32 %v1516, 0.0
      %v1569 = vmax.f32 %v1521, 0.0
      %v1570 = vmax.f32 %v1524, 0.0
      %v1571 = vmax.f32 %v1529, 0.0
      %v1572 = vmax.f32 %v1532, 0.0
      %v1573 = vmax.f32 %v1537, 0.0
      %v1574 = vmax.f32 %v1540, 0.0
      %v1575 = vld [vmem:[#allocation2] sm:$0xff]
      %v1576 = vadd.f32 %v1543, %v1544
      %v1577 = vadd.f32 %v1576, %v1545
      %v1578 = vadd.f32 %v1577, %v1546
      %v1579 = vadd.f32 %v1578, %v1547
      %v1580 = vadd.f32 %v1579, %v1548
      %v1581 = vadd.f32 %v1580, %v1549
      %v1582 = vadd.f32 %v1581, %v1550
      %v1583 = vadd.f32 %v1582, %v1551
      %v1584 = vadd.f32 %v1583, %v1552
      %v1585 = vadd.f32 %v1584, %v1553
      %v1586 = vadd.f32 %v1585, %v1554
      %v1587 = vadd.f32 %v1586, %v1555
      %v1588 = vadd.f32 %v1587, %v1556
      %v1589 = vadd.f32 %v1588, %v1557
      %v1590 = vadd.f32 %v1589, %v1558
      %v1591 = vadd.f32 %v1590, %v1559
      %v1592 = vadd.f32 %v1591, %v1560
      %v1593 = vadd.f32 %v1592, %v1561
      %v1594 = vadd.f32 %v1593, %v1562
      %v1595 = vadd.f32 %v1594, %v1563
      %v1596 = vadd.f32 %v1595, %v1564
      %v1597 = vadd.f32 %v1596, %v1565
      %v1598 = vadd.f32 %v1597, %v1566
      %v1599 = vadd.f32 %v1598, %v1567
      %v1600 = vadd.f32 %v1599, %v1568
      %v1601 = vadd.f32 %v1600, %v1569
      %v1602 = vadd.f32 %v1601, %v1570
      %v1603 = vadd.f32 %v1602, %v1571
      %v1604 = vadd.f32 %v1603, %v1572
      %v1605 = vadd.f32 %v1604, %v1573
      %v1606 = vadd.f32 %v1605, %v1574
      %v1607 = vadd.f32 %v1575, %v1606
      %1608 = vst [vmem:[#allocation2] sm:$0xff] %v1607
      // Predicated region
      $region33: #{_pretrain_forward.2} parent=27 // pred_check
        %p1609 = pneg %p1197
      $region34: #{_pretrain_forward.2} parent=27 // pred_check_branch
        %1611 = sbr.rel (%p1609) target = $region36
      $region35: #{_pretrain_forward.2} parent=27 // pred_region
        %v1612 = vld [vmem:[#allocation2] sm:$0xff]
        %v1613 = vrot.slane %v1612, 4
        %v1614 = vadd.f32 %v1612, %v1613
        %v1615 = vrot.slane %v1614, 2
        %v1616 = vadd.f32 %v1614, %v1615
        %v1617 = vrot.slane %v1616, 1
        %v1618 = vadd.f32 %v1616, %v1617
        %1619 = vst [vmem:[%s207] sm:$0x1] %v1618
      $region36: #{_pretrain_forward.2} parent=27 // pred_fallthru
        _
      %p1620 = scmp.lt.s32.totalorder %s24, 1
      %s1621 = scalar_select %p1620, %s24, 1
      %p1622 = scmp.lt.s32.totalorder %s25, 1
      %s1623 = scalar_select %p1622, %s25, 1
      %s1624 = smul.addr %s1621, 2
      %s1625 = sadd.s32 %s1623, %s1624
      %s1626 = scalar_lea.vmem %s3, %s1625
      // Predicated region
      $region37: #{_pretrain_forward.2} parent=27 // pred_check
        %p1627 = pneg %p109
      $region38: #{_pretrain_forward.2} parent=27 // pred_check_branch
        %1629 = sbr.rel (%p1627) target = $region40
      $region39: #{_pretrain_forward.2} parent=27 // pred_region
        _
      $region40: #{_pretrain_forward.2} parent=27 // pred_fallthru
        _
    $region28: #{_pretrain_forward.2} parent=5 // pred_fallthru
      _
    %p1630 = scmp.le.s32.totalorder 2, %s14
    // Predicated region
    $region41: #{_pretrain_forward.2} parent=5 // pred_check
      %p1631 = pneg %p1630
    $region42: #{_pretrain_forward.2} parent=5 // pred_check_branch
      %1633 = sbr.rel (%p1631) target = $region44
    $region43: #{_pretrain_forward.2} parent=5 // pred_region
      %s1634 = ssub.s32 %s14, 2
      // Predicated region
      $region45: #{_pretrain_forward.2} parent=43 // pred_check
        %p1635 = pneg %p115
      $region46: #{_pretrain_forward.2} parent=43 // pred_check_branch
        %1637 = sbr.rel (%p1635) target = $region48
      $region47: #{_pretrain_forward.2} parent=43 // pred_region
        %p1638 = scmp.lt.s32.totalorder %s27, 1
        %s1639 = scalar_select %p1638, %s27, 1
        %p1640 = scmp.lt.s32.totalorder %s28, 1
        %s1641 = scalar_select %p1640, %s28, 1
        %s1642 = smul.addr %s1639, 2
        %s1643 = sadd.s32 %s1641, %s1642
        %s1644 = scalar_lea.vmem %s3, %s1643
      $region48: #{_pretrain_forward.2} parent=43 // pred_fallthru
        _
    $region44: #{_pretrain_forward.2} parent=5 // pred_fallthru
      _
  $region6: #{_pretrain_forward.2} parent=0 // loop_footer
    %s18 = sadd.s32 1, %s14
  $region7: #{_pretrain_forward.2} parent=0 // loop_footer_branch
    %13 = sbr.rel target = $region3
  $region8: #{_pretrain_forward.2} parent=0 // loop_exit
    _

</llo_original>
